<compile_context>
chip_gen: v5e
topology: v5e:2x2
jax: 0.10.0
libtpu: 0.0.40
codegen_flags: <defaults>
</compile_context>

<pallas_src>
import functools

import numpy as np
import jax
import jax.numpy as jnp
from jax.experimental import pallas as pl
from jax.experimental.pallas import tpu as pltpu


# ----------------------- CQT basis construction (host-side numpy) ---------------------

def _hann_periodic(l: int) -> np.ndarray:
    n = np.arange(l)
    return 0.5 - 0.5 * np.cos(2.0 * np.pi * n / l)


def _create_cqt_kernels(Q, fs, fmin, n_bins, bins_per_octave, norm=1):
    """Mirror of nnAudio.utils.create_cqt_kernels (hann window, L1-normalized)."""
    freqs = fmin * 2.0 ** (np.arange(n_bins) / float(bins_per_octave))
    if np.max(freqs) > fs / 2:
        raise ValueError("The top bin exceeds the Nyquist frequency.")
    lengths = np.ceil(Q * fs / freqs)
    max_len = int(max(lengths))
    fft_len = int(2 ** np.ceil(np.log2(max_len)))
    kernels = np.zeros((n_bins, fft_len), dtype=np.complex128)
    for k in range(n_bins):
        freq = freqs[k]
        l = int(np.ceil(Q * fs / freq))
        if l % 2 == 1:
            start = int(np.ceil(fft_len / 2.0 - l / 2.0)) - 1
        else:
            start = int(np.ceil(fft_len / 2.0 - l / 2.0))
        window = _hann_periodic(l)
        sig = window * np.exp(
            np.arange((-l) // 2, l // 2) * 1j * 2.0 * np.pi * freq / fs) / l
        if norm:
            sig = sig / np.linalg.norm(sig, norm)
        kernels[k, start:start + l] = sig
    return kernels, fft_len, lengths.astype(np.float64)


def _round_up(x: int, m: int) -> int:
    return (x + m - 1) // m * m


def build_hcqt_weight(harmonics, sr, fmin, bins_per_semitone, n_bins, hop_length,
                      center_bins=True):
    """Fused weight W[KW, n_harm*n_bins*2] (f32), KW a multiple of hop_length.

    Returns (W, KW, pad) with pad = kw_max//2 (the single reflect-pad amount that
    reproduces every per-harmonic ReflectionPad1d(kw_h//2))."""
    bins_per_octave = 12 * bins_per_semitone
    if center_bins:
        fmin = fmin / 2.0 ** ((bins_per_semitone - 1) / (24.0 * bins_per_semitone))
    Q = 1.0 / (2.0 ** (1.0 / bins_per_octave) - 1.0)       # filter_scale = 1
    per_h = []
    for h in harmonics:
        kern, kw, lengths = _create_cqt_kernels(Q, sr, h * fmin, n_bins, bins_per_octave)
        per_h.append((kern, kw, lengths))
    kw_max = max(kw for _, kw, _ in per_h)
    pad = kw_max // 2
    KW = _round_up(kw_max, hop_length)
    n_harm = len(harmonics)
    W = np.zeros((KW, n_harm * n_bins * 2), dtype=np.float32)
    for hi, (kern, kw, lengths) in enumerate(per_h):
        off = pad - kw // 2                                 # center smaller kernels
        scale = np.sqrt(lengths)                            # 'librosa' normalization
        real = np.real(kern) * scale[:, None]               # (n_bins, kw)
        imag = -np.imag(kern) * scale[:, None]              # CQT_imag = -conv(x, imag)
        col0 = hi * n_bins * 2
        W[off:off + kw, col0 + 0:col0 + 2 * n_bins:2] = real.T.astype(np.float32)
        W[off:off + kw, col0 + 1:col0 + 2 * n_bins:2] = imag.T.astype(np.float32)
    return W, KW, pad


def prepare_weights(W, hop_length, lane_pad=128, compute_dtype=jnp.bfloat16):
    """(KW, N) f32 -> (C, hop, NPAD) compute_dtype, NPAD = N rounded up to 128 lanes."""
    KW, N = W.shape
    assert KW % hop_length == 0
    C = KW // hop_length
    NPAD = _round_up(N, lane_pad)
    Wp = np.zeros((C, hop_length, NPAD), dtype=np.float32)
    Wp[:, :, :N] = W.reshape(C, hop_length, N)
    return jnp.asarray(Wp, dtype=compute_dtype)


# ------------------------------- Pallas conv kernel -----------------------------------

def _hcqt_conv_kernel(xm_ref, xh_ref, w_ref, o_ref, *, tm, n_shifts):
    # xm_ref: (1, tm, hop)    main hop-sized chunk rows of this time tile
    # xh_ref: (1, hb, hop)    aligned halo rows from the next tile (hb >= n_shifts)
    # w_ref : (C, hop, NPAD)  fused CQT weights, fully resident in VMEM
    # o_ref : (1, tm, NPAD)   f32 output tile (lane-dense, multiple of 128)
    x = jnp.concatenate([xm_ref[0], xh_ref[0]], axis=0)     # (tm + hb, hop)
    # conv-as-shifted-matmul: out[t] = sum_c chunks[t + c] @ W[c]
    acc = jnp.dot(x[0:tm, :], w_ref[0], preferred_element_type=jnp.float32)
    for c in range(1, n_shifts):
        acc = acc + jnp.dot(x[c:c + tm, :], w_ref[c],
                            preferred_element_type=jnp.float32)
    o_ref[0] = acc


# --------------------------------- forward wrapper ------------------------------------

def hcqt_forward(audio, w_pallas, pad, hop_length, n_harm, n_bins, tm_max=128):
    """audio: (num_channels, num_samples) f32
       w_pallas: (C, hop, NPAD) prepared weights
       returns (num_channels, num_harmonics, num_freqs, num_timesteps, 2) f32"""
    B, L = audio.shape
    C, hop, NPAD = w_pallas.shape
    assert hop == hop_length
    N = n_harm * n_bins * 2
    if pad > L - 1:
        raise ValueError("reflect padding requires num_samples > kw_max // 2")

    T = L // hop_length + 1                         # nnAudio center/reflect convention
    hb = _round_up(C, 8)                            # halo rows: sublane-aligned block
    tm = min(tm_max, _round_up(T, 8))               # time-tile rows (multiple of 8)
    tm = max(hb, (tm // hb) * hb)                   # ... and a multiple of the halo block
    nt = -(-T // tm)                                # time tiles per channel
    n_chunks = nt * tm + hb                         # chunk rows per channel (padded)

    x = jnp.pad(audio, ((0, 0), (pad, pad)), mode="reflect").astype(w_pallas.dtype)
    extra = n_chunks * hop - x.shape[1]
    x = jnp.pad(x, ((0, 0), (0, max(extra, 0))))    # zero tail (zero taps / dropped frames)
    chunks = x.reshape(B, n_chunks, hop)

    kernel = functools.partial(_hcqt_conv_kernel, tm=tm, n_shifts=C)
    r = tm // hb                                    # halo block stride in hb-blocks
    out = pl.pallas_call(
        kernel,
        out_shape=jax.ShapeDtypeStruct((B, nt * tm, NPAD), jnp.float32),
        grid_spec=pltpu.PrefetchScalarGridSpec(
            num_scalar_prefetch=0,
            grid=(B, nt),
            in_specs=[
                pl.BlockSpec((1, tm, hop), lambda b, i: (b, i, 0)),          # main tile
                pl.BlockSpec((1, hb, hop), lambda b, i: (b, (i + 1) * r, 0)),  # halo
                pl.BlockSpec((C, hop, NPAD), lambda b, i: (0, 0, 0)),        # W resident
            ],
            out_specs=pl.BlockSpec((1, tm, NPAD), lambda b, i: (b, i, 0))),
        compiler_params=pltpu.CompilerParams(
            dimension_semantics=("parallel", "parallel")),   # megacore sharding
    )(chunks, chunks, w_pallas)

    out = out[:, :T, :N]                            # drop padded frames / zero lanes
    out = out.reshape(B, T, n_harm, n_bins, 2)
    # TODO(synk): if the consumer accepts (B, T, H, F, 2), skip this transpose (it is an
    # extra HBM round trip of the output); kept to match the PyTorch output layout.
    return jnp.transpose(out, (0, 2, 3, 1, 4))      # (B, H, F, T, 2)


# --------------------------- numpy reference (for validation) -------------------------

def hcqt_reference(audio_np, harmonics, sr, fmin, bins_per_semitone, n_bins,
                   hop_length, center_bins=True):
    """Direct per-harmonic framed-matmul reference (f64), independent of the fused
    shift-decomposed path."""
    bins_per_octave = 12 * bins_per_semitone
    if center_bins:
        fmin = fmin / 2.0 ** ((bins_per_semitone - 1) / (24.0 * bins_per_semitone))
    Q = 1.0 / (2.0 ** (1.0 / bins_per_octave) - 1.0)
    B, L = audio_np.shape
    T = L // hop_length + 1
    outs = []
    for h in harmonics:
        kern, kw, lengths = _create_cqt_kernels(Q, sr, h * fmin, n_bins, bins_per_octave)
        scale = np.sqrt(lengths)
        real_k = np.real(kern) * scale[:, None]
        imag_k = -np.imag(kern) * scale[:, None]
        xp = np.pad(audio_np, ((0, 0), (kw // 2, kw // 2)), mode="reflect")
        o = np.zeros((B, n_bins, T, 2))
        for t in range(T):
            seg = xp[:, t * hop_length:t * hop_length + kw]        # (B, kw)
            o[:, :, t, 0] = seg @ real_k.T
            o[:, :, t, 1] = seg @ imag_k.T
        outs.append(o)
    return np.stack(outs, axis=1)                                  # (B, H, F, T, 2)


# --------------------------------------- main ------------------------------------------

if __name__ == "__main__":
    # Small, deterministic configuration consistent with HarmonicCQT.__init__.
    harmonics = (1, 2, 3)
    sr = 2000
    hop_length = 256
    fmin = 32.7
    n_bins = 24
    bins_per_semitone = 1
    num_channels = 2
    num_samples = 2048
    compute_dtype = jnp.bfloat16    # MXU-native on v6e/v7x; set jnp.float32 for exactness

    W_np, KW, pad = build_hcqt_weight(harmonics, sr, fmin, bins_per_semitone,
                                      n_bins, hop_length, center_bins=True)
    W_pallas = prepare_weights(W_np, hop_length, compute_dtype=compute_dtype)

    key = jax.random.PRNGKey(0)
    audio = jax.random.normal(key, (num_channels, num_samples), dtype=jnp.float32)

    fwd = jax.jit(functools.partial(
        hcqt_forward, pad=pad, hop_length=hop_length,
        n_harm=len(harmonics), n_bins=n_bins))
    out = jax.block_until_ready(fwd(audio, W_pallas))

    expected_shape = (num_channels, len(harmonics), n_bins,
                      num_samples // hop_length + 1, 2)
    assert out.shape == expected_shape, (out.shape, expected_shape)
    assert out.dtype == jnp.float32
    assert bool(jnp.all(jnp.isfinite(out)))

    # Loose validation vs. an independent f64 reference (loose because operands are bf16).
    ref = hcqt_reference(np.asarray(audio, dtype=np.float64), harmonics, sr, fmin,
                         bins_per_semitone, n_bins, hop_length)
    rel_err = (np.linalg.norm(np.asarray(out, dtype=np.float64) - ref)
               / np.linalg.norm(ref))
    assert rel_err < 5e-2, f"relative error too large: {rel_err}"

    print("KERNEL_OK")
</pallas_src>

<mosaic_0001>
module attributes {stable_mosaic.version = 11 : i64} {
  func.func @_hcqt_conv_kernel(%arg0: i32, %arg1: i32, %arg2: memref<1x16x256xbf16, #tpu.memory_space<vmem>>, %arg3: memref<1x8x256xbf16, #tpu.memory_space<vmem>>, %arg4: memref<8x256x256xbf16, #tpu.memory_space<vmem>>, %arg5: memref<1x16x256xf32, #tpu.memory_space<vmem>>) attributes {dimension_semantics = [#tpu.dimension_semantics<parallel>, #tpu.dimension_semantics<parallel>], iteration_bounds = array<i64: 2, 1>, scalar_prefetch = 0 : i64, scratch_operands = 0 : i64, tpu.core_type = #tpu.core_type<tc>, window_params = [{transform_indices = @transform_0, window_bounds = array<i64: 1, 16, 256>}, {transform_indices = @transform_1, window_bounds = array<i64: 1, 8, 256>}, {pipeline_mode = #tpu.pipeline_mode<synchronous>, transform_indices = @transform_2, window_bounds = array<i64: 8, 256, 256>}, {transform_indices = @transform_3, window_bounds = array<i64: 1, 16, 256>}]} {
    %c0 = arith.constant 0 : index
    %c0_0 = arith.constant 0 : index
    %c0_1 = arith.constant 0 : index
    %0 = vector.load %arg2[%c0, %c0_0, %c0_1] : memref<1x16x256xbf16, #tpu.memory_space<vmem>>, vector<1x16x256xbf16>
    %1 = vector.shape_cast %0 : vector<1x16x256xbf16> to vector<16x256xbf16>
    %c0_2 = arith.constant 0 : index
    %c0_3 = arith.constant 0 : index
    %c0_4 = arith.constant 0 : index
    %2 = vector.load %arg3[%c0_2, %c0_3, %c0_4] : memref<1x8x256xbf16, #tpu.memory_space<vmem>>, vector<1x8x256xbf16>
    %3 = vector.shape_cast %2 : vector<1x8x256xbf16> to vector<8x256xbf16>
    %4 = tpu.concatenate %1, %3 in 0 : vector<16x256xbf16>, vector<8x256xbf16> -> vector<24x256xbf16>
    %5 = vector.extract_strided_slice %4 {offsets = [0, 0], sizes = [16, 256], strides = [1, 1]} : vector<24x256xbf16> to vector<16x256xbf16>
    %c0_5 = arith.constant 0 : index
    %c0_6 = arith.constant 0 : index
    %c0_7 = arith.constant 0 : index
    %6 = vector.load %arg4[%c0_5, %c0_6, %c0_7] : memref<8x256x256xbf16, #tpu.memory_space<vmem>>, vector<1x256x256xbf16>
    %7 = vector.shape_cast %6 : vector<1x256x256xbf16> to vector<256x256xbf16>
    %cst = arith.constant dense<0.000000e+00> : vector<16x256xf32>
    %8 = tpu.matmul %5, %7, %cst {dimension_numbers = #tpu.dot_dimension_numbers<[1], [0], [0], [1], [0, 0, 1, 1], [], []>} : vector<16x256xbf16>, vector<256x256xbf16>, vector<16x256xf32> -> vector<16x256xf32>
    %9 = vector.extract_strided_slice %4 {offsets = [1, 0], sizes = [16, 256], strides = [1, 1]} : vector<24x256xbf16> to vector<16x256xbf16>
    %c1 = arith.constant 1 : index
    %c0_8 = arith.constant 0 : index
    %c0_9 = arith.constant 0 : index
    %10 = vector.load %arg4[%c1, %c0_8, %c0_9] : memref<8x256x256xbf16, #tpu.memory_space<vmem>>, vector<1x256x256xbf16>
    %11 = vector.shape_cast %10 : vector<1x256x256xbf16> to vector<256x256xbf16>
    %cst_10 = arith.constant dense<0.000000e+00> : vector<16x256xf32>
    %12 = tpu.matmul %9, %11, %cst_10 {dimension_numbers = #tpu.dot_dimension_numbers<[1], [0], [0], [1], [0, 0, 1, 1], [], []>} : vector<16x256xbf16>, vector<256x256xbf16>, vector<16x256xf32> -> vector<16x256xf32>
    %13 = arith.addf %8, %12 : vector<16x256xf32>
    %14 = vector.extract_strided_slice %4 {offsets = [2, 0], sizes = [16, 256], strides = [1, 1]} : vector<24x256xbf16> to vector<16x256xbf16>
    %c2 = arith.constant 2 : index
    %c0_11 = arith.constant 0 : index
    %c0_12 = arith.constant 0 : index
    %15 = vector.load %arg4[%c2, %c0_11, %c0_12] : memref<8x256x256xbf16, #tpu.memory_space<vmem>>, vector<1x256x256xbf16>
    %16 = vector.shape_cast %15 : vector<1x256x256xbf16> to vector<256x256xbf16>
    %cst_13 = arith.constant dense<0.000000e+00> : vector<16x256xf32>
    %17 = tpu.matmul %14, %16, %cst_13 {dimension_numbers = #tpu.dot_dimension_numbers<[1], [0], [0], [1], [0, 0, 1, 1], [], []>} : vector<16x256xbf16>, vector<256x256xbf16>, vector<16x256xf32> -> vector<16x256xf32>
    %18 = arith.addf %13, %17 : vector<16x256xf32>
    %19 = vector.extract_strided_slice %4 {offsets = [3, 0], sizes = [16, 256], strides = [1, 1]} : vector<24x256xbf16> to vector<16x256xbf16>
    %c3 = arith.constant 3 : index
    %c0_14 = arith.constant 0 : index
    %c0_15 = arith.constant 0 : index
    %20 = vector.load %arg4[%c3, %c0_14, %c0_15] : memref<8x256x256xbf16, #tpu.memory_space<vmem>>, vector<1x256x256xbf16>
    %21 = vector.shape_cast %20 : vector<1x256x256xbf16> to vector<256x256xbf16>
    %cst_16 = arith.constant dense<0.000000e+00> : vector<16x256xf32>
    %22 = tpu.matmul %19, %21, %cst_16 {dimension_numbers = #tpu.dot_dimension_numbers<[1], [0], [0], [1], [0, 0, 1, 1], [], []>} : vector<16x256xbf16>, vector<256x256xbf16>, vector<16x256xf32> -> vector<16x256xf32>
    %23 = arith.addf %18, %22 : vector<16x256xf32>
    %24 = vector.extract_strided_slice %4 {offsets = [4, 0], sizes = [16, 256], strides = [1, 1]} : vector<24x256xbf16> to vector<16x256xbf16>
    %c4 = arith.constant 4 : index
    %c0_17 = arith.constant 0 : index
    %c0_18 = arith.constant 0 : index
    %25 = vector.load %arg4[%c4, %c0_17, %c0_18] : memref<8x256x256xbf16, #tpu.memory_space<vmem>>, vector<1x256x256xbf16>
    %26 = vector.shape_cast %25 : vector<1x256x256xbf16> to vector<256x256xbf16>
    %cst_19 = arith.constant dense<0.000000e+00> : vector<16x256xf32>
    %27 = tpu.matmul %24, %26, %cst_19 {dimension_numbers = #tpu.dot_dimension_numbers<[1], [0], [0], [1], [0, 0, 1, 1], [], []>} : vector<16x256xbf16>, vector<256x256xbf16>, vector<16x256xf32> -> vector<16x256xf32>
    %28 = arith.addf %23, %27 : vector<16x256xf32>
    %29 = vector.extract_strided_slice %4 {offsets = [5, 0], sizes = [16, 256], strides = [1, 1]} : vector<24x256xbf16> to vector<16x256xbf16>
    %c5 = arith.constant 5 : index
    %c0_20 = arith.constant 0 : index
    %c0_21 = arith.constant 0 : index
    %30 = vector.load %arg4[%c5, %c0_20, %c0_21] : memref<8x256x256xbf16, #tpu.memory_space<vmem>>, vector<1x256x256xbf16>
    %31 = vector.shape_cast %30 : vector<1x256x256xbf16> to vector<256x256xbf16>
    %cst_22 = arith.constant dense<0.000000e+00> : vector<16x256xf32>
    %32 = tpu.matmul %29, %31, %cst_22 {dimension_numbers = #tpu.dot_dimension_numbers<[1], [0], [0], [1], [0, 0, 1, 1], [], []>} : vector<16x256xbf16>, vector<256x256xbf16>, vector<16x256xf32> -> vector<16x256xf32>
    %33 = arith.addf %28, %32 : vector<16x256xf32>
    %34 = vector.extract_strided_slice %4 {offsets = [6, 0], sizes = [16, 256], strides = [1, 1]} : vector<24x256xbf16> to vector<16x256xbf16>
    %c6 = arith.constant 6 : index
    %c0_23 = arith.constant 0 : index
    %c0_24 = arith.constant 0 : index
    %35 = vector.load %arg4[%c6, %c0_23, %c0_24] : memref<8x256x256xbf16, #tpu.memory_space<vmem>>, vector<1x256x256xbf16>
    %36 = vector.shape_cast %35 : vector<1x256x256xbf16> to vector<256x256xbf16>
    %cst_25 = arith.constant dense<0.000000e+00> : vector<16x256xf32>
    %37 = tpu.matmul %34, %36, %cst_25 {dimension_numbers = #tpu.dot_dimension_numbers<[1], [0], [0], [1], [0, 0, 1, 1], [], []>} : vector<16x256xbf16>, vector<256x256xbf16>, vector<16x256xf32> -> vector<16x256xf32>
    %38 = arith.addf %33, %37 : vector<16x256xf32>
    %39 = vector.extract_strided_slice %4 {offsets = [7, 0], sizes = [16, 256], strides = [1, 1]} : vector<24x256xbf16> to vector<16x256xbf16>
    %c7 = arith.constant 7 : index
    %c0_26 = arith.constant 0 : index
    %c0_27 = arith.constant 0 : index
    %40 = vector.load %arg4[%c7, %c0_26, %c0_27] : memref<8x256x256xbf16, #tpu.memory_space<vmem>>, vector<1x256x256xbf16>
    %41 = vector.shape_cast %40 : vector<1x256x256xbf16> to vector<256x256xbf16>
    %cst_28 = arith.constant dense<0.000000e+00> : vector<16x256xf32>
    %42 = tpu.matmul %39, %41, %cst_28 {dimension_numbers = #tpu.dot_dimension_numbers<[1], [0], [0], [1], [0, 0, 1, 1], [], []>} : vector<16x256xbf16>, vector<256x256xbf16>, vector<16x256xf32> -> vector<16x256xf32>
    %43 = arith.addf %38, %42 : vector<16x256xf32>
    %c0_29 = arith.constant 0 : index
    %c0_30 = arith.constant 0 : index
    %c0_31 = arith.constant 0 : index
    %44 = vector.load %arg5[%c0_29, %c0_30, %c0_31] : memref<1x16x256xf32, #tpu.memory_space<vmem>>, vector<1x16x256xf32>
    %45 = vector.shape_cast %44 : vector<1x16x256xf32> to vector<16x256xf32>
    %46 = vector.shape_cast %43 : vector<16x256xf32> to vector<1x16x256xf32>
    tpu.vector_store %arg5[%c0_29, %c0_30, %c0_31], %46 {strides = array<i32>} : memref<1x16x256xf32, #tpu.memory_space<vmem>>, vector<1x16x256xf32>,
    return
  }
  func.func @transform_0(%arg0: i32, %arg1: i32) -> (i32, i32, i32) {
    %c0_i32 = arith.constant 0 : i32
    %c0_i32_0 = arith.constant 0 : i32
    return %arg0, %arg1, %c0_i32 : i32, i32, i32
  }
  func.func @transform_1(%arg0: i32, %arg1: i32) -> (i32, i32, i32) {
    %c1_i32 = arith.constant 1 : i32
    %0 = arith.addi %arg1, %c1_i32 : i32
    %c2_i32 = arith.constant 2 : i32
    %1 = arith.muli %0, %c2_i32 : i32
    %c0_i32 = arith.constant 0 : i32
    %c0_i32_0 = arith.constant 0 : i32
    return %arg0, %1, %c0_i32 : i32, i32, i32
  }
  func.func @transform_2(%arg0: i32, %arg1: i32) -> (i32, i32, i32) {
    %c0_i32 = arith.constant 0 : i32
    %c0_i32_0 = arith.constant 0 : i32
    %c0_i32_1 = arith.constant 0 : i32
    %c0_i32_2 = arith.constant 0 : i32
    return %c0_i32, %c0_i32_0, %c0_i32_1 : i32, i32, i32
  }
  func.func @transform_3(%arg0: i32, %arg1: i32) -> (i32, i32, i32) {
    %c0_i32 = arith.constant 0 : i32
    %c0_i32_0 = arith.constant 0 : i32
    return %arg0, %arg1, %c0_i32 : i32, i32, i32
  }
}

</mosaic_0001>

<llo_original>
// kernel: hcqt_forward.1
$region0: #{hcqt_forward.1}
  #allocation0 [shape = 'u32[]', space=smem, size = 0x4, offset = 0x4, fixed_abs, tag = 'smem constant byte address 0x4 - core index']
  #allocation1 [shape = 'u32[72,128]{1,0:T(1,128)}', space=vmem, size = 0x9000, scoped, tag = 'internal scratch']
  %s0 = inlined_call_operand.vmem [shape: bf16[2,24,256], index: 0, kind: input, shape index: {}, may-alias: {0,1}]
  %s1 = inlined_call_operand.vmem [shape: bf16[2,24,256], index: 1, kind: input, shape index: {}, may-alias: {0,1}]
  %s2 = inlined_call_operand.hbm [shape: bf16[8,256,256], index: 2, kind: input, shape index: {}]
  %s3 = inlined_call_operand.vmem [shape: f32[2,16,256], index: 3, kind: output, shape index: {}]
  %s4 = sld [smem:[#allocation0]]
  $region49: #{hcqt_forward.1} parent=0
    _
  %s6 = ssub.s32 1, %s4
  %s7 = scalar_select 0, %s6, %s4
  $region1: #{hcqt_forward.1} parent=0
    #allocation2 [shape = 'u8[1048576]{0}', space=vmem, size = 0x100000, scoped, tag = 'input window, operand 2, single buffered']
    #allocation3 [shape = 's32[2]{0}', space=sflag, size = 0x8, scoped, tag = 'scoped memory for hcqt_forward.1']
    %8 = vsyncpa [#allocation3], 0
    loop: start=0, step=1, limit=4
    $region2: #{hcqt_forward.1} parent=1 // loop_pre_header
      _
    $region3: #{hcqt_forward.1} parent=1 // loop_header
      %s10 = sphi 0, %s14
      %p11 = scmp.ge.s32.totalorder %s10, 4
      %s17 = sphi 0, %s29
      %s18 = sphi 0, %s25
      %s19 = sphi 0, %s17
      %s20 = sphi 0, %s18
      %s21 = sphi 0, %s19
      %s22 = sphi 0, %s20
      %s34 = sphi 0, %s36
      %s37 = sphi 0, %s34
      %s38 = sphi 0, %s37
      %s54 = sphi 0, %s38
      %s66 = sphi 0, %s68
      %s69 = sphi 0, %s66
      %s70 = sphi 0, %s69
      %s86 = sphi 0, %s70
      %s90 = sphi 0, %s90
      %s92 = sphi 0, %s90
      %s93 = sphi 0, %s92
      %s107 = sphi 0, %s93
      %s115 = sphi 0, %s117
      %s118 = sphi 0, %s115
      %s119 = sphi 0, %s118
      %s135 = sphi 0, %s119
    $region4: #{hcqt_forward.1} parent=1 // loop_header_branch
      %13 = sbr.rel (%p11) target = $region8
    $region5: #{hcqt_forward.1} parent=1 // loop_body
      %s15 = ssub.s32 %s10, 1
      %s16 = ssub.s32 %s10, 2
      %s23 = sadd.s32 1, %s18
      %p24 = scmp.ge.s32.totalorder %s23, 1
      %s25 = scalar_select %p24, 0, %s23
      %s26 = sadd.s32 1, %s17
      %s27 = scalar_select %p24, %s26, %s17
      %p28 = scmp.ge.s32.totalorder %s27, 2
      %s29 = scalar_select %p28, 0, %s27
      %s30 = ssub.s32 %s17, %s29
      %s31 = ssub.s32 %s18, %s25
      %s32 = sor.u32 %s30, %s31
      %p33 = scmp.eq.s32.totalorder %s32, 0
      %s35 = sadd.s32 %s34, 1
      %s36 = scalar_select %p33, %s34, %s35
      %p39 = pneg %p33
      %p40 = scmp.eq.s32.totalorder %s10, 1
      %p41 = por %p39, %p40
      %p42 = scmp.ne.s32.totalorder %s34, %s37
      %p43 = scmp.eq.s32.totalorder %s10, 0
      %p44 = por %p42, %p43
      %p45 = scmp.ne.s32.totalorder %s34, %s37
      %p46 = scmp.eq.s32.totalorder %s15, 1
      %p47 = por %p45, %p46
      %p48 = scmp.ne.s32.totalorder %s37, %s38
      %p49 = scmp.eq.s32.totalorder %s15, 0
      %p50 = por %p48, %p49
      %p51 = scmp.ne.s32.totalorder %s37, %s38
      %p52 = scmp.eq.s32.totalorder %s16, 1
      %p53 = por %p51, %p52
      %p55 = scmp.ne.s32.totalorder %s38, %s54
      %p56 = scmp.eq.s32.totalorder %s16, 0
      %p57 = por %p55, %p56
      %s58 = sadd.s32 %s18, 1
      %s59 = smul.u32 %s58, 2
      %s60 = sadd.s32 %s25, 1
      %s61 = smul.u32 %s60, 2
      %s62 = ssub.s32 %s17, %s29
      %s63 = ssub.s32 %s59, %s61
      %s64 = sor.u32 %s62, %s63
      %p65 = scmp.eq.s32.totalorder %s64, 0
      %s67 = sadd.s32 %s66, 1
      %s68 = scalar_select %p65, %s66, %s67
      %p71 = pneg %p65
      %p72 = scmp.eq.s32.totalorder %s10, 1
      %p73 = por %p71, %p72
      %p74 = scmp.ne.s32.totalorder %s66, %s69
      %p75 = scmp.eq.s32.totalorder %s10, 0
      %p76 = por %p74, %p75
      %p77 = scmp.ne.s32.totalorder %s66, %s69
      %p78 = scmp.eq.s32.totalorder %s15, 1
      %p79 = por %p77, %p78
      %p80 = scmp.ne.s32.totalorder %s69, %s70
      %p81 = scmp.eq.s32.totalorder %s15, 0
      %p82 = por %p80, %p81
      %p83 = scmp.ne.s32.totalorder %s69, %s70
      %p84 = scmp.eq.s32.totalorder %s16, 1
      %p85 = por %p83, %p84
      %p87 = scmp.ne.s32.totalorder %s70, %s86
      %p88 = scmp.eq.s32.totalorder %s16, 0
      %p89 = por %p87, %p88
      %s91 = sadd.s32 %s90, 1
      %p94 = scmp.eq.s32.totalorder %s10, 1
      %p95 = scmp.ne.s32.totalorder %s90, %s92
      %p96 = scmp.eq.s32.totalorder %s10, 0
      %p97 = por %p95, %p96
      %p98 = scmp.ne.s32.totalorder %s90, %s92
      %p99 = scmp.eq.s32.totalorder %s15, 1
      %p100 = por %p98, %p99
      %p101 = scmp.ne.s32.totalorder %s92, %s93
      %p102 = scmp.eq.s32.totalorder %s15, 0
      %p103 = por %p101, %p102
      %p104 = scmp.ne.s32.totalorder %s92, %s93
      %p105 = scmp.eq.s32.totalorder %s16, 1
      %p106 = por %p104, %p105
      %p108 = scmp.ne.s32.totalorder %s93, %s107
      %p109 = scmp.eq.s32.totalorder %s16, 0
      %p110 = por %p108, %p109
      %s111 = ssub.s32 %s17, %s29
      %s112 = ssub.s32 %s18, %s25
      %s113 = sor.u32 %s111, %s112
      %p114 = scmp.eq.s32.totalorder %s113, 0
      %s116 = sadd.s32 %s115, 1
      %s117 = scalar_select %p114, %s115, %s116
      %p120 = pneg %p114
      %p121 = scmp.eq.s32.totalorder %s10, 1
      %p122 = por %p120, %p121
      %p123 = scmp.ne.s32.totalorder %s115, %s118
      %p124 = scmp.eq.s32.totalorder %s10, 0
      %p125 = por %p123, %p124
      %p126 = scmp.ne.s32.totalorder %s115, %s118
      %p127 = scmp.eq.s32.totalorder %s15, 1
      %p128 = por %p126, %p127
      %p129 = scmp.ne.s32.totalorder %s118, %s119
      %p130 = scmp.eq.s32.totalorder %s15, 0
      %p131 = por %p129, %p130
      %p132 = scmp.ne.s32.totalorder %s118, %s119
      %p133 = scmp.eq.s32.totalorder %s16, 1
      %p134 = por %p132, %p133
      %p136 = scmp.ne.s32.totalorder %s119, %s135
      %p137 = scmp.eq.s32.totalorder %s16, 0
      %p138 = por %p136, %p137
      %p139 = scmp.le.s32.totalorder 1, %s10
      %p140 = scmp.lt.s32.totalorder %s10, 3
      %p141 = pnand %p139, %p140
      %p142 = pneg %p141
      // Predicated region
      $region9: #{hcqt_forward.1} parent=5 // pred_check
        _
      $region10: #{hcqt_forward.1} parent=5 // pred_check_branch
        %144 = sbr.rel (%p141) target = $region12
      $region11: #{hcqt_forward.1} parent=5 // pred_region
        %s145 = ssub.s32 %s10, 1
        // Predicated region
        $region13: #{hcqt_forward.1} parent=11 // pred_check
          %p146 = pneg %p103
        $region14: #{hcqt_forward.1} parent=11 // pred_check_branch
          %148 = sbr.rel (%p146) target = $region16
        $region15: #{hcqt_forward.1} parent=11 // pred_region
          %150 = vsyncadd [#allocation3], 0
          %s151 = sshll.u32 %s2, 4
          %s152 = int_to_ptr.hbm [resolvable:$true] %s151
          %s153 = sshll.u32 [#allocation2], 4
          %s154 = int_to_ptr.vmem [resolvable:$true] %s153
          %159 = dma.hbm_to_vmem [thread:$0]  %s152, 32768, %s154, [#allocation3], 128, 128, 8
        $region16: #{hcqt_forward.1} parent=11 // pred_fallthru
          _
      $region12: #{hcqt_forward.1} parent=5 // pred_fallthru
        _
      %p160 = scmp.lt.s32.totalorder %s10, 2
      // Predicated region
      $region17: #{hcqt_forward.1} parent=5 // pred_check
        %p161 = pneg %p160
      $region18: #{hcqt_forward.1} parent=5 // pred_check_branch
        %163 = sbr.rel (%p161) target = $region20
      $region19: #{hcqt_forward.1} parent=5 // pred_region
        // Predicated region
        $region21: #{hcqt_forward.1} parent=19 // pred_check
          %p164 = pneg %p44
        $region22: #{hcqt_forward.1} parent=19 // pred_check_branch
          %166 = sbr.rel (%p164) target = $region24
        $region23: #{hcqt_forward.1} parent=19 // pred_region
          %s167 = smul.u32 2, %s18
          %s168 = ssub.s32 3, %s167
          %p169 = scmp.lt.s32.totalorder %s168, 2
          %s170 = scalar_select %p169, %s168, 2
          %s171 = smul.u32 4, %s170
          %s172 = smul.u32 %s171, 2
          %p173 = scmp.lt.s32.totalorder %s17, 1
          %s174 = scalar_select %p173, %s17, 1
          %p175 = scmp.lt.s32.totalorder %s167, 2
          %s176 = scalar_select %p175, %s167, 2
          %s177 = smul.addr %s176, 2
          %s178 = smul.addr %s174, 6
          %s179 = sadd.s32 %s177, %s178
          %s180 = smul.addr %s179, 4
          %s181 = scalar_lea.vmem %s0, %s180
          %s182 = smul.u32 2, %s18
          %s183 = ssub.s32 3, %s182
          %p184 = scmp.lt.s32.totalorder %s183, 2
          %s185 = scalar_select %p184, %s183, 2
          %s186 = smul.u32 4, %s185
          %s187 = smul.u32 %s186, 2
        $region24: #{hcqt_forward.1} parent=19 // pred_fallthru
          _
        // Predicated region
        $region25: #{hcqt_forward.1} parent=19 // pred_check
          %p188 = pneg %p76
        $region26: #{hcqt_forward.1} parent=19 // pred_check_branch
          %190 = sbr.rel (%p188) target = $region28
        $region27: #{hcqt_forward.1} parent=19 // pred_region
          %s191 = sadd.s32 %s18, 1
          %s192 = smul.u32 %s191, 2
          %p193 = scmp.lt.s32.totalorder %s17, 1
          %s194 = scalar_select %p193, %s17, 1
          %p195 = scmp.lt.s32.totalorder %s192, 2
          %s196 = scalar_select %p195, %s192, 2
          %s197 = smul.addr %s196, 2
          %s198 = smul.addr %s194, 6
          %s199 = sadd.s32 %s197, %s198
          %s200 = smul.addr %s199, 4
          %s201 = scalar_lea.vmem %s1, %s200
          %s202 = sadd.s32 %s18, 1
          %s203 = smul.u32 %s202, 2
        $region28: #{hcqt_forward.1} parent=19 // pred_fallthru
          _
      $region20: #{hcqt_forward.1} parent=5 // pred_fallthru
        _
      %p204 = scmp.le.s32.totalorder 1, %s10
      %p205 = scmp.lt.s32.totalorder %s10, 3
      %p206 = pnand %p204, %p205
      %p207 = pneg %p206
      // Predicated region
      $region29: #{hcqt_forward.1} parent=5 // pred_check
        _
      $region30: #{hcqt_forward.1} parent=5 // pred_check_branch
        %209 = sbr.rel (%p206) target = $region32
      $region31: #{hcqt_forward.1} parent=5 // pred_region
        %s210 = ssub.s32 %s10, 1
        // Predicated region
        $region33: #{hcqt_forward.1} parent=31 // pred_check
          %p211 = pneg %p103
        $region34: #{hcqt_forward.1} parent=31 // pred_check_branch
          %213 = sbr.rel (%p211) target = $region36
        $region35: #{hcqt_forward.1} parent=31 // pred_region
          %215 = dma.done [#allocation3], 32768
        $region36: #{hcqt_forward.1} parent=31 // pred_fallthru
          _
        %s216 = smul.u32 2, %s20
        %s217 = ssub.s32 3, %s216
        %p218 = scmp.lt.s32.totalorder %s217, 2
        %s219 = scalar_select %p218, %s217, 2
        %s220 = smul.u32 4, %s219
        %s221 = smul.u32 %s220, 2
        %p222 = scmp.lt.s32.totalorder %s19, 1
        %s223 = scalar_select %p222, %s19, 1
        %p224 = scmp.lt.s32.totalorder %s216, 2
        %s225 = scalar_select %p224, %s216, 2
        %s226 = smul.addr %s225, 2
        %s227 = smul.addr %s223, 6
        %s228 = sadd.s32 %s226, %s227
        %s229 = smul.addr %s228, 4
        %s230 = scalar_lea.vmem %s0, %s229
        %p231 = pneg %p50
        %p232 = pneg %p47
        %s233 = sadd.s32 %s20, 1
        %s234 = smul.u32 %s233, 2
        %p235 = scmp.lt.s32.totalorder %s19, 1
        %s236 = scalar_select %p235, %s19, 1
        %p237 = scmp.lt.s32.totalorder %s234, 2
        %s238 = scalar_select %p237, %s234, 2
        %s239 = smul.addr %s238, 2
        %s240 = smul.addr %s236, 6
        %s241 = sadd.s32 %s239, %s240
        %s242 = smul.addr %s241, 4
        %s243 = scalar_lea.vmem %s1, %s242
        %p244 = pneg %p82
        %p245 = pneg %p79
        %p246 = pneg %p103
        %p247 = pneg %p100
        %p248 = pneg %p131
        %p249 = pneg %p128
        %s250 = smul.u32 2, %s20
        %p251 = scmp.lt.s32.totalorder %s19, 1
        %s252 = scalar_select %p251, %s19, 1
        %p253 = scmp.lt.s32.totalorder %s250, 1
        %s254 = scalar_select %p253, %s250, 1
        %s255 = smul.addr %s254, 2
        %s256 = smul.addr %s252, 4
        %s257 = sadd.s32 %s255, %s256
        %s258 = smul.addr %s257, 8
        %s259 = scalar_lea.vmem %s3, %s258
        %s260 = smul.u32 2, %s20
        %s261 = ssub.s32 3, %s260
        %p262 = scmp.lt.s32.totalorder %s261, 2
        %s263 = scalar_select %p262, %s261, 2
        %s264 = smul.u32 4, %s263
        %s265 = smul.u32 %s264, 2
        %p266 = scmp.lt.s32.totalorder %s19, 1
        %s267 = scalar_select %p266, %s19, 1
        %p268 = scmp.lt.s32.totalorder %s260, 2
        %s269 = scalar_select %p268, %s260, 2
        %s270 = smul.addr %s269, 2
        %s271 = smul.addr %s267, 6
        %s272 = sadd.s32 %s270, %s271
        %s273 = smul.addr %s272, 4
        %s274 = scalar_lea.vmem %s0, %s273
        %s275 = smul.u32 2, %s20
        %s276 = ssub.s32 3, %s275
        %p277 = scmp.lt.s32.totalorder %s276, 2
        %s278 = scalar_select %p277, %s276, 2
        %s279 = smul.u32 4, %s278
        %s280 = smul.u32 %s279, 2
        %s281 = sadd.s32 %s20, 1
        %s282 = smul.u32 %s281, 2
        %p283 = scmp.lt.s32.totalorder %s19, 1
        %s284 = scalar_select %p283, %s19, 1
        %p285 = scmp.lt.s32.totalorder %s282, 2
        %s286 = scalar_select %p285, %s282, 2
        %s287 = smul.addr %s286, 2
        %s288 = smul.addr %s284, 6
        %s289 = sadd.s32 %s287, %s288
        %s290 = smul.addr %s289, 4
        %s291 = scalar_lea.vmem %s1, %s290
        %s292 = sadd.s32 %s20, 1
        %s293 = smul.u32 %s292, 2
        %s294 = smul.u32 2, %s20
        %p295 = scmp.lt.s32.totalorder %s19, 1
        %s296 = scalar_select %p295, %s19, 1
        %p297 = scmp.lt.s32.totalorder %s294, 1
        %s298 = scalar_select %p297, %s294, 1
        %s299 = smul.addr %s298, 2
        %s300 = smul.addr %s296, 4
        %s301 = sadd.s32 %s299, %s300
        %s302 = smul.addr %s301, 8
        %s303 = scalar_lea.vmem %s3, %s302
        %s304 = smul.u32 2, %s20
        %v305 = vld [vmem:[%s274] sm:$0xff]
        %v306 = vld [vmem:[%s274 + $0x8] sm:$0xff]
        %v307 = vld [vmem:[%s291] sm:$0xff]
        %v310 = vunpack.c.l.b16 %v305
        %v311 = vunpack.c.h.b16 %v305
        %v312 = vunpack.c.l.b16 %v306
        %v313 = vunpack.c.h.b16 %v306
        %v314 = vpack.c.b16 %v312, %v310
        %v315 = vpack.c.b16 %v313, %v311
        %v319 = vunpack.c.l.b16 %v307
        %v320 = vunpack.c.h.b16 %v307
        %v321 = vpack.c.b16 %v319, %v319
        %v322 = vpack.c.b16 %v320, %v320
        %v323 = vld [vmem:[#allocation2] sm:$0xff]
        %v324 = vld [vmem:[#allocation2 + $0x8] sm:$0xff]
        %v325 = vld [vmem:[#allocation2 + $0x10] sm:$0xff]
        %v326 = vld [vmem:[#allocation2 + $0x18] sm:$0xff]
        %v327 = vld [vmem:[#allocation2 + $0x20] sm:$0xff]
        %v328 = vld [vmem:[#allocation2 + $0x28] sm:$0xff]
        %v329 = vld [vmem:[#allocation2 + $0x30] sm:$0xff]
        %v330 = vld [vmem:[#allocation2 + $0x38] sm:$0xff]
        %v331 = vld [vmem:[#allocation2 + $0x40] sm:$0xff]
        %v332 = vld [vmem:[#allocation2 + $0x48] sm:$0xff]
        %v333 = vld [vmem:[#allocation2 + $0x50] sm:$0xff]
        %v334 = vld [vmem:[#allocation2 + $0x58] sm:$0xff]
        %v335 = vld [vmem:[#allocation2 + $0x60] sm:$0xff]
        %v336 = vld [vmem:[#allocation2 + $0x68] sm:$0xff]
        %v337 = vld [vmem:[#allocation2 + $0x70] sm:$0xff]
        %v338 = vld [vmem:[#allocation2 + $0x78] sm:$0xff]
        %v339 = vld [vmem:[#allocation2 + $0x80] sm:$0xff]
        %v340 = vld [vmem:[#allocation2 + $0x88] sm:$0xff]
        %v341 = vld [vmem:[#allocation2 + $0x90] sm:$0xff]
        %v342 = vld [vmem:[#allocation2 + $0x98] sm:$0xff]
        %v343 = vld [vmem:[#allocation2 + $0xa0] sm:$0xff]
        %v344 = vld [vmem:[#allocation2 + $0xa8] sm:$0xff]
        %v345 = vld [vmem:[#allocation2 + $0xb0] sm:$0xff]
        %v346 = vld [vmem:[#allocation2 + $0xb8] sm:$0xff]
        %v347 = vld [vmem:[#allocation2 + $0xc0] sm:$0xff]
        %v348 = vld [vmem:[#allocation2 + $0xc8] sm:$0xff]
        %v349 = vld [vmem:[#allocation2 + $0xd0] sm:$0xff]
        %v350 = vld [vmem:[#allocation2 + $0xd8] sm:$0xff]
        %v351 = vld [vmem:[#allocation2 + $0xe0] sm:$0xff]
        %v352 = vld [vmem:[#allocation2 + $0xe8] sm:$0xff]
        %v353 = vld [vmem:[#allocation2 + $0xf0] sm:$0xff]
        %v354 = vld [vmem:[#allocation2 + $0xf8] sm:$0xff]
        %s355 = scalar_lea.vmem [#allocation2], 256
        %v356 = vld [vmem:[%s355] sm:$0xff]
        %v357 = vld [vmem:[%s355 + $0x8] sm:$0xff]
        %v358 = vld [vmem:[%s355 + $0x10] sm:$0xff]
        %v359 = vld [vmem:[%s355 + $0x18] sm:$0xff]
        %v360 = vld [vmem:[%s355 + $0x20] sm:$0xff]
        %v361 = vld [vmem:[%s355 + $0x28] sm:$0xff]
        %v362 = vld [vmem:[%s355 + $0x30] sm:$0xff]
        %v363 = vld [vmem:[%s355 + $0x38] sm:$0xff]
        %v364 = vld [vmem:[%s355 + $0x40] sm:$0xff]
        %v365 = vld [vmem:[%s355 + $0x48] sm:$0xff]
        %v366 = vld [vmem:[%s355 + $0x50] sm:$0xff]
        %v367 = vld [vmem:[%s355 + $0x58] sm:$0xff]
        %v368 = vld [vmem:[%s355 + $0x60] sm:$0xff]
        %v369 = vld [vmem:[%s355 + $0x68] sm:$0xff]
        %v370 = vld [vmem:[%s355 + $0x70] sm:$0xff]
        %v371 = vld [vmem:[%s355 + $0x78] sm:$0xff]
        %v372 = vld [vmem:[%s355 + $0x80] sm:$0xff]
        %v373 = vld [vmem:[%s355 + $0x88] sm:$0xff]
        %v374 = vld [vmem:[%s355 + $0x90] sm:$0xff]
        %v375 = vld [vmem:[%s355 + $0x98] sm:$0xff]
        %v376 = vld [vmem:[%s355 + $0xa0] sm:$0xff]
        %v377 = vld [vmem:[%s355 + $0xa8] sm:$0xff]
        %v378 = vld [vmem:[%s355 + $0xb0] sm:$0xff]
        %v379 = vld [vmem:[%s355 + $0xb8] sm:$0xff]
        %v380 = vld [vmem:[%s355 + $0xc0] sm:$0xff]
        %v381 = vld [vmem:[%s355 + $0xc8] sm:$0xff]
        %v382 = vld [vmem:[%s355 + $0xd0] sm:$0xff]
        %v383 = vld [vmem:[%s355 + $0xd8] sm:$0xff]
        %v384 = vld [vmem:[%s355 + $0xe0] sm:$0xff]
        %v385 = vld [vmem:[%s355 + $0xe8] sm:$0xff]
        %v386 = vld [vmem:[%s355 + $0xf0] sm:$0xff]
        %v387 = vld [vmem:[%s355 + $0xf8] sm:$0xff]
        %vm388 = vsmask.f32 7424
        %v390 = vshrl.u32 %v314, 16
        %v392 = vshll.u32 %v314, 16
        %v394 = vrot.slane %v392, 1
        %v395 = vor.u32 %v390, %v394
        %v397 = vshll.u32 %v321, 16
        %v399 = vrot.slane %v397, 1
        %v400 = vsel %vm388, %v395, %v399
        %v402 = vshrl.u32 %v315, 16
        %v404 = vshll.u32 %v315, 16
        %v406 = vrot.slane %v404, 1
        %v407 = vor.u32 %v402, %v406
        %v409 = vshll.u32 %v322, 16
        %v411 = vrot.slane %v409, 1
        %v412 = vsel %vm388, %v407, %v411
        %v447 = vunpack.c.l.b16 %v356
        %v448 = vunpack.c.h.b16 %v356
        %v449 = vunpack.c.l.b16 %v357
        %v450 = vunpack.c.h.b16 %v357
        %v451 = vunpack.c.l.b16 %v358
        %v452 = vunpack.c.h.b16 %v358
        %v453 = vunpack.c.l.b16 %v359
        %v454 = vunpack.c.h.b16 %v359
        %v455 = vunpack.c.l.b16 %v360
        %v456 = vunpack.c.h.b16 %v360
        %v457 = vunpack.c.l.b16 %v361
        %v458 = vunpack.c.h.b16 %v361
        %v459 = vunpack.c.l.b16 %v362
        %v460 = vunpack.c.h.b16 %v362
        %v461 = vunpack.c.l.b16 %v363
        %v462 = vunpack.c.h.b16 %v363
        %v463 = vunpack.c.l.b16 %v364
        %v464 = vunpack.c.h.b16 %v364
        %v465 = vunpack.c.l.b16 %v365
        %v466 = vunpack.c.h.b16 %v365
        %v467 = vunpack.c.l.b16 %v366
        %v468 = vunpack.c.h.b16 %v366
        %v469 = vunpack.c.l.b16 %v367
        %v470 = vunpack.c.h.b16 %v367
        %v471 = vunpack.c.l.b16 %v368
        %v472 = vunpack.c.h.b16 %v368
        %v473 = vunpack.c.l.b16 %v369
        %v474 = vunpack.c.h.b16 %v369
        %v475 = vunpack.c.l.b16 %v370
        %v476 = vunpack.c.h.b16 %v370
        %v477 = vunpack.c.l.b16 %v371
        %v478 = vunpack.c.h.b16 %v371
        %v479 = vunpack.c.l.b16 %v372
        %v480 = vunpack.c.h.b16 %v372
        %v481 = vunpack.c.l.b16 %v373
        %v482 = vunpack.c.h.b16 %v373
        %v483 = vunpack.c.l.b16 %v374
        %v484 = vunpack.c.h.b16 %v374
        %v485 = vunpack.c.l.b16 %v375
        %v486 = vunpack.c.h.b16 %v375
        %v487 = vunpack.c.l.b16 %v376
        %v488 = vunpack.c.h.b16 %v376
        %v489 = vunpack.c.l.b16 %v377
        %v490 = vunpack.c.h.b16 %v377
        %v491 = vunpack.c.l.b16 %v378
        %v492 = vunpack.c.h.b16 %v378
        %v493 = vunpack.c.l.b16 %v379
        %v494 = vunpack.c.h.b16 %v379
        %v495 = vunpack.c.l.b16 %v380
        %v496 = vunpack.c.h.b16 %v380
        %v497 = vunpack.c.l.b16 %v381
        %v498 = vunpack.c.h.b16 %v381
        %v499 = vunpack.c.l.b16 %v382
        %v500 = vunpack.c.h.b16 %v382
        %v501 = vunpack.c.l.b16 %v383
        %v502 = vunpack.c.h.b16 %v383
        %v503 = vunpack.c.l.b16 %v384
        %v504 = vunpack.c.h.b16 %v384
        %v505 = vunpack.c.l.b16 %v385
        %v506 = vunpack.c.h.b16 %v385
        %v507 = vunpack.c.l.b16 %v386
        %v508 = vunpack.c.h.b16 %v386
        %v509 = vunpack.c.l.b16 %v387
        %v510 = vunpack.c.h.b16 %v387
        %v511 = vpack.c.b16 %v449, %v447
        %v512 = vpack.c.b16 %v450, %v448
        %v513 = vpack.c.b16 %v453, %v451
        %v514 = vpack.c.b16 %v454, %v452
        %v515 = vpack.c.b16 %v457, %v455
        %v516 = vpack.c.b16 %v458, %v456
        %v517 = vpack.c.b16 %v461, %v459
        %v518 = vpack.c.b16 %v462, %v460
        %v519 = vpack.c.b16 %v465, %v463
        %v520 = vpack.c.b16 %v466, %v464
        %v521 = vpack.c.b16 %v469, %v467
        %v522 = vpack.c.b16 %v470, %v468
        %v523 = vpack.c.b16 %v473, %v471
        %v524 = vpack.c.b16 %v474, %v472
        %v525 = vpack.c.b16 %v477, %v475
        %v526 = vpack.c.b16 %v478, %v476
        %v527 = vpack.c.b16 %v481, %v479
        %v528 = vpack.c.b16 %v482, %v480
        %v529 = vpack.c.b16 %v485, %v483
        %v530 = vpack.c.b16 %v486, %v484
        %v531 = vpack.c.b16 %v489, %v487
        %v532 = vpack.c.b16 %v490, %v488
        %v533 = vpack.c.b16 %v493, %v491
        %v534 = vpack.c.b16 %v494, %v492
        %v535 = vpack.c.b16 %v497, %v495
        %v536 = vpack.c.b16 %v498, %v496
        %v537 = vpack.c.b16 %v501, %v499
        %v538 = vpack.c.b16 %v502, %v500
        %v539 = vpack.c.b16 %v505, %v503
        %v540 = vpack.c.b16 %v506, %v504
        %v541 = vpack.c.b16 %v509, %v507
        %v542 = vpack.c.b16 %v510, %v508
        %575 = vmatpush.bf16.msra.mxu0 %v525
        %576 = vmatpush.bf16.msra.mxu0 %v523
        %577 = vmatpush.bf16.msra.mxu0 %v521
        %578 = vmatpush.bf16.msra.mxu0 %v519
        %579 = vmatpush.bf16.msra.mxu0 %v517
        %580 = vmatpush.bf16.msra.mxu0 %v515
        %581 = vmatpush.bf16.msra.mxu0 %v513
        %582 = vmatpush.bf16.msra.mxu0 %v511
        %583 = vmatmul.bf16.gmra.mxu0 %v400
        %v584 = vpop.f32.mrf.mxu0
        %v585 = vadd.f32 0.0, %v584
        %v586 = vpop.f32.mrf.mxu0
        %v587 = vadd.f32 0.0, %v586
        %588 = vdwg.mxu0
        %589 = vmatpush.bf16.msra.mxu0 %v541
        %590 = vmatpush.bf16.msra.mxu0 %v539
        %591 = vmatpush.bf16.msra.mxu0 %v537
        %592 = vmatpush.bf16.msra.mxu0 %v535
        %593 = vmatpush.bf16.msra.mxu0 %v533
        %594 = vmatpush.bf16.msra.mxu0 %v531
        %595 = vmatpush.bf16.msra.mxu0 %v529
        %596 = vmatpush.bf16.msra.mxu0 %v527
        %597 = vmatmul.bf16.gmra.mxu0 %v412
        %v598 = vpop.f32.mrf.mxu0
        %v599 = vadd.f32 %v585, %v598
        %v600 = vpop.f32.mrf.mxu0
        %v601 = vadd.f32 %v587, %v600
        %602 = vdwg.mxu0
        %603 = vmatpush.bf16.msra.mxu0 %v526
        %604 = vmatpush.bf16.msra.mxu0 %v524
        %605 = vmatpush.bf16.msra.mxu0 %v522
        %606 = vmatpush.bf16.msra.mxu0 %v520
        %607 = vmatpush.bf16.msra.mxu0 %v518
        %608 = vmatpush.bf16.msra.mxu0 %v516
        %609 = vmatpush.bf16.msra.mxu0 %v514
        %610 = vmatpush.bf16.msra.mxu0 %v512
        %611 = vmatmul.bf16.gmra.mxu0 %v400
        %v612 = vpop.f32.mrf.mxu0
        %v613 = vadd.f32 0.0, %v612
        %v614 = vpop.f32.mrf.mxu0
        %v615 = vadd.f32 0.0, %v614
        %616 = vdwg.mxu0
        %617 = vmatpush.bf16.msra.mxu0 %v542
        %618 = vmatpush.bf16.msra.mxu0 %v540
        %619 = vmatpush.bf16.msra.mxu0 %v538
        %620 = vmatpush.bf16.msra.mxu0 %v536
        %621 = vmatpush.bf16.msra.mxu0 %v534
        %622 = vmatpush.bf16.msra.mxu0 %v532
        %623 = vmatpush.bf16.msra.mxu0 %v530
        %624 = vmatpush.bf16.msra.mxu0 %v528
        %625 = vmatmul.bf16.gmra.mxu0 %v412
        %v626 = vpop.f32.mrf.mxu0
        %v627 = vadd.f32 %v613, %v626
        %v628 = vpop.f32.mrf.mxu0
        %v629 = vadd.f32 %v615, %v628
        %630 = vdwg.mxu0
        %v663 = vunpack.c.l.b16 %v323
        %v664 = vunpack.c.h.b16 %v323
        %v665 = vunpack.c.l.b16 %v324
        %v666 = vunpack.c.h.b16 %v324
        %v667 = vunpack.c.l.b16 %v325
        %v668 = vunpack.c.h.b16 %v325
        %v669 = vunpack.c.l.b16 %v326
        %v670 = vunpack.c.h.b16 %v326
        %v671 = vunpack.c.l.b16 %v327
        %v672 = vunpack.c.h.b16 %v327
        %v673 = vunpack.c.l.b16 %v328
        %v674 = vunpack.c.h.b16 %v328
        %v675 = vunpack.c.l.b16 %v329
        %v676 = vunpack.c.h.b16 %v329
        %v677 = vunpack.c.l.b16 %v330
        %v678 = vunpack.c.h.b16 %v330
        %v679 = vunpack.c.l.b16 %v331
        %v680 = vunpack.c.h.b16 %v331
        %v681 = vunpack.c.l.b16 %v332
        %v682 = vunpack.c.h.b16 %v332
        %v683 = vunpack.c.l.b16 %v333
        %v684 = vunpack.c.h.b16 %v333
        %v685 = vunpack.c.l.b16 %v334
        %v686 = vunpack.c.h.b16 %v334
        %v687 = vunpack.c.l.b16 %v335
        %v688 = vunpack.c.h.b16 %v335
        %v689 = vunpack.c.l.b16 %v336
        %v690 = vunpack.c.h.b16 %v336
        %v691 = vunpack.c.l.b16 %v337
        %v692 = vunpack.c.h.b16 %v337
        %v693 = vunpack.c.l.b16 %v338
        %v694 = vunpack.c.h.b16 %v338
        %v695 = vunpack.c.l.b16 %v339
        %v696 = vunpack.c.h.b16 %v339
        %v697 = vunpack.c.l.b16 %v340
        %v698 = vunpack.c.h.b16 %v340
        %v699 = vunpack.c.l.b16 %v341
        %v700 = vunpack.c.h.b16 %v341
        %v701 = vunpack.c.l.b16 %v342
        %v702 = vunpack.c.h.b16 %v342
        %v703 = vunpack.c.l.b16 %v343
        %v704 = vunpack.c.h.b16 %v343
        %v705 = vunpack.c.l.b16 %v344
        %v706 = vunpack.c.h.b16 %v344
        %v707 = vunpack.c.l.b16 %v345
        %v708 = vunpack.c.h.b16 %v345
        %v709 = vunpack.c.l.b16 %v346
        %v710 = vunpack.c.h.b16 %v346
        %v711 = vunpack.c.l.b16 %v347
        %v712 = vunpack.c.h.b16 %v347
        %v713 = vunpack.c.l.b16 %v348
        %v714 = vunpack.c.h.b16 %v348
        %v715 = vunpack.c.l.b16 %v349
        %v716 = vunpack.c.h.b16 %v349
        %v717 = vunpack.c.l.b16 %v350
        %v718 = vunpack.c.h.b16 %v350
        %v719 = vunpack.c.l.b16 %v351
        %v720 = vunpack.c.h.b16 %v351
        %v721 = vunpack.c.l.b16 %v352
        %v722 = vunpack.c.h.b16 %v352
        %v723 = vunpack.c.l.b16 %v353
        %v724 = vunpack.c.h.b16 %v353
        %v725 = vunpack.c.l.b16 %v354
        %v726 = vunpack.c.h.b16 %v354
        %v727 = vpack.c.b16 %v665, %v663
        %v728 = vpack.c.b16 %v666, %v664
        %v729 = vpack.c.b16 %v669, %v667
        %v730 = vpack.c.b16 %v670, %v668
        %v731 = vpack.c.b16 %v673, %v671
        %v732 = vpack.c.b16 %v674, %v672
        %v733 = vpack.c.b16 %v677, %v675
        %v734 = vpack.c.b16 %v678, %v676
        %v735 = vpack.c.b16 %v681, %v679
        %v736 = vpack.c.b16 %v682, %v680
        %v737 = vpack.c.b16 %v685, %v683
        %v738 = vpack.c.b16 %v686, %v684
        %v739 = vpack.c.b16 %v689, %v687
        %v740 = vpack.c.b16 %v690, %v688
        %v741 = vpack.c.b16 %v693, %v691
        %v742 = vpack.c.b16 %v694, %v692
        %v743 = vpack.c.b16 %v697, %v695
        %v744 = vpack.c.b16 %v698, %v696
        %v745 = vpack.c.b16 %v701, %v699
        %v746 = vpack.c.b16 %v702, %v700
        %v747 = vpack.c.b16 %v705, %v703
        %v748 = vpack.c.b16 %v706, %v704
        %v749 = vpack.c.b16 %v709, %v707
        %v750 = vpack.c.b16 %v710, %v708
        %v751 = vpack.c.b16 %v713, %v711
        %v752 = vpack.c.b16 %v714, %v712
        %v753 = vpack.c.b16 %v717, %v715
        %v754 = vpack.c.b16 %v718, %v716
        %v755 = vpack.c.b16 %v721, %v719
        %v756 = vpack.c.b16 %v722, %v720
        %v757 = vpack.c.b16 %v725, %v723
        %v758 = vpack.c.b16 %v726, %v724
        %791 = vmatpush.bf16.msra.mxu0 %v741
        %792 = vmatpush.bf16.msra.mxu0 %v739
        %793 = vmatpush.bf16.msra.mxu0 %v737
        %794 = vmatpush.bf16.msra.mxu0 %v735
        %795 = vmatpush.bf16.msra.mxu0 %v733
        %796 = vmatpush.bf16.msra.mxu0 %v731
        %797 = vmatpush.bf16.msra.mxu0 %v729
        %798 = vmatpush.bf16.msra.mxu0 %v727
        %799 = vmatmul.bf16.gmra.mxu0 %v314
        %v800 = vpop.f32.mrf.mxu0
        %v801 = vadd.f32 %v599, %v800
        %v802 = vpop.f32.mrf.mxu0
        %v803 = vadd.f32 %v601, %v802
        %804 = vdwg.mxu0
        %805 = vmatpush.bf16.msra.mxu0 %v757
        %806 = vmatpush.bf16.msra.mxu0 %v755
        %807 = vmatpush.bf16.msra.mxu0 %v753
        %808 = vmatpush.bf16.msra.mxu0 %v751
        %809 = vmatpush.bf16.msra.mxu0 %v749
        %810 = vmatpush.bf16.msra.mxu0 %v747
        %811 = vmatpush.bf16.msra.mxu0 %v745
        %812 = vmatpush.bf16.msra.mxu0 %v743
        %813 = vmatmul.bf16.gmra.mxu0 %v315
        %v814 = vpop.f32.mrf.mxu0
        %v815 = vadd.f32 %v801, %v814
        %v816 = vpop.f32.mrf.mxu0
        %v817 = vadd.f32 %v803, %v816
        %818 = vdwg.mxu0
        %819 = vmatpush.bf16.msra.mxu0 %v742
        %820 = vmatpush.bf16.msra.mxu0 %v740
        %821 = vmatpush.bf16.msra.mxu0 %v738
        %822 = vmatpush.bf16.msra.mxu0 %v736
        %823 = vmatpush.bf16.msra.mxu0 %v734
        %824 = vmatpush.bf16.msra.mxu0 %v732
        %825 = vmatpush.bf16.msra.mxu0 %v730
        %826 = vmatpush.bf16.msra.mxu0 %v728
        %827 = vmatmul.bf16.gmra.mxu0 %v314
        %v828 = vpop.f32.mrf.mxu0
        %v829 = vadd.f32 %v627, %v828
        %v830 = vpop.f32.mrf.mxu0
        %v831 = vadd.f32 %v629, %v830
        %832 = vdwg.mxu0
        %833 = vmatpush.bf16.msra.mxu0 %v758
        %834 = vmatpush.bf16.msra.mxu0 %v756
        %835 = vmatpush.bf16.msra.mxu0 %v754
        %836 = vmatpush.bf16.msra.mxu0 %v752
        %837 = vmatpush.bf16.msra.mxu0 %v750
        %838 = vmatpush.bf16.msra.mxu0 %v748
        %839 = vmatpush.bf16.msra.mxu0 %v746
        %840 = vmatpush.bf16.msra.mxu0 %v744
        %841 = vmatmul.bf16.gmra.mxu0 %v315
        %v842 = vpop.f32.mrf.mxu0
        %v843 = vadd.f32 %v829, %v842
        %v844 = vpop.f32.mrf.mxu0
        %v845 = vadd.f32 %v831, %v844
        %846 = vdwg.mxu0
        %s847 = scalar_lea.vmem [#allocation2], 512
        %v848 = vld [vmem:[%s847] sm:$0xff]
        %v849 = vld [vmem:[%s847 + $0x8] sm:$0xff]
        %v850 = vld [vmem:[%s847 + $0x10] sm:$0xff]
        %v851 = vld [vmem:[%s847 + $0x18] sm:$0xff]
        %v852 = vld [vmem:[%s847 + $0x20] sm:$0xff]
        %v853 = vld [vmem:[%s847 + $0x28] sm:$0xff]
        %v854 = vld [vmem:[%s847 + $0x30] sm:$0xff]
        %v855 = vld [vmem:[%s847 + $0x38] sm:$0xff]
        %v856 = vld [vmem:[%s847 + $0x40] sm:$0xff]
        %v857 = vld [vmem:[%s847 + $0x48] sm:$0xff]
        %v858 = vld [vmem:[%s847 + $0x50] sm:$0xff]
        %v859 = vld [vmem:[%s847 + $0x58] sm:$0xff]
        %v860 = vld [vmem:[%s847 + $0x60] sm:$0xff]
        %v861 = vld [vmem:[%s847 + $0x68] sm:$0xff]
        %v862 = vld [vmem:[%s847 + $0x70] sm:$0xff]
        %v863 = vld [vmem:[%s847 + $0x78] sm:$0xff]
        %v864 = vld [vmem:[%s847 + $0x80] sm:$0xff]
        %v865 = vld [vmem:[%s847 + $0x88] sm:$0xff]
        %v866 = vld [vmem:[%s847 + $0x90] sm:$0xff]
        %v867 = vld [vmem:[%s847 + $0x98] sm:$0xff]
        %v868 = vld [vmem:[%s847 + $0xa0] sm:$0xff]
        %v869 = vld [vmem:[%s847 + $0xa8] sm:$0xff]
        %v870 = vld [vmem:[%s847 + $0xb0] sm:$0xff]
        %v871 = vld [vmem:[%s847 + $0xb8] sm:$0xff]
        %v872 = vld [vmem:[%s847 + $0xc0] sm:$0xff]
        %v873 = vld [vmem:[%s847 + $0xc8] sm:$0xff]
        %v874 = vld [vmem:[%s847 + $0xd0] sm:$0xff]
        %v875 = vld [vmem:[%s847 + $0xd8] sm:$0xff]
        %v876 = vld [vmem:[%s847 + $0xe0] sm:$0xff]
        %v877 = vld [vmem:[%s847 + $0xe8] sm:$0xff]
        %v878 = vld [vmem:[%s847 + $0xf0] sm:$0xff]
        %v879 = vld [vmem:[%s847 + $0xf8] sm:$0xff]
        %vm880 = vcmask 1046528
        %v881 = vrot.slane %v314, 1
        %v882 = vrot.slane %v321, 1
        %v883 = vsel %vm880, %v881, %v882
        %v884 = vrot.slane %v315, 1
        %v885 = vrot.slane %v322, 1
        %v886 = vsel %vm880, %v884, %v885
        %v921 = vunpack.c.l.b16 %v848
        %v922 = vunpack.c.h.b16 %v848
        %v923 = vunpack.c.l.b16 %v849
        %v924 = vunpack.c.h.b16 %v849
        %v925 = vunpack.c.l.b16 %v850
        %v926 = vunpack.c.h.b16 %v850
        %v927 = vunpack.c.l.b16 %v851
        %v928 = vunpack.c.h.b16 %v851
        %v929 = vunpack.c.l.b16 %v852
        %v930 = vunpack.c.h.b16 %v852
        %v931 = vunpack.c.l.b16 %v853
        %v932 = vunpack.c.h.b16 %v853
        %v933 = vunpack.c.l.b16 %v854
        %v934 = vunpack.c.h.b16 %v854
        %v935 = vunpack.c.l.b16 %v855
        %v936 = vunpack.c.h.b16 %v855
        %v937 = vunpack.c.l.b16 %v856
        %v938 = vunpack.c.h.b16 %v856
        %v939 = vunpack.c.l.b16 %v857
        %v940 = vunpack.c.h.b16 %v857
        %v941 = vunpack.c.l.b16 %v858
        %v942 = vunpack.c.h.b16 %v858
        %v943 = vunpack.c.l.b16 %v859
        %v944 = vunpack.c.h.b16 %v859
        %v945 = vunpack.c.l.b16 %v860
        %v946 = vunpack.c.h.b16 %v860
        %v947 = vunpack.c.l.b16 %v861
        %v948 = vunpack.c.h.b16 %v861
        %v949 = vunpack.c.l.b16 %v862
        %v950 = vunpack.c.h.b16 %v862
        %v951 = vunpack.c.l.b16 %v863
        %v952 = vunpack.c.h.b16 %v863
        %v953 = vunpack.c.l.b16 %v864
        %v954 = vunpack.c.h.b16 %v864
        %v955 = vunpack.c.l.b16 %v865
        %v956 = vunpack.c.h.b16 %v865
        %v957 = vunpack.c.l.b16 %v866
        %v958 = vunpack.c.h.b16 %v866
        %v959 = vunpack.c.l.b16 %v867
        %v960 = vunpack.c.h.b16 %v867
        %v961 = vunpack.c.l.b16 %v868
        %v962 = vunpack.c.h.b16 %v868
        %v963 = vunpack.c.l.b16 %v869
        %v964 = vunpack.c.h.b16 %v869
        %v965 = vunpack.c.l.b16 %v870
        %v966 = vunpack.c.h.b16 %v870
        %v967 = vunpack.c.l.b16 %v871
        %v968 = vunpack.c.h.b16 %v871
        %v969 = vunpack.c.l.b16 %v872
        %v970 = vunpack.c.h.b16 %v872
        %v971 = vunpack.c.l.b16 %v873
        %v972 = vunpack.c.h.b16 %v873
        %v973 = vunpack.c.l.b16 %v874
        %v974 = vunpack.c.h.b16 %v874
        %v975 = vunpack.c.l.b16 %v875
        %v976 = vunpack.c.h.b16 %v875
        %v977 = vunpack.c.l.b16 %v876
        %v978 = vunpack.c.h.b16 %v876
        %v979 = vunpack.c.l.b16 %v877
        %v980 = vunpack.c.h.b16 %v877
        %v981 = vunpack.c.l.b16 %v878
        %v982 = vunpack.c.h.b16 %v878
        %v983 = vunpack.c.l.b16 %v879
        %v984 = vunpack.c.h.b16 %v879
        %v985 = vpack.c.b16 %v923, %v921
        %v986 = vpack.c.b16 %v924, %v922
        %v987 = vpack.c.b16 %v927, %v925
        %v988 = vpack.c.b16 %v928, %v926
        %v989 = vpack.c.b16 %v931, %v929
        %v990 = vpack.c.b16 %v932, %v930
        %v991 = vpack.c.b16 %v935, %v933
        %v992 = vpack.c.b16 %v936, %v934
        %v993 = vpack.c.b16 %v939, %v937
        %v994 = vpack.c.b16 %v940, %v938
        %v995 = vpack.c.b16 %v943, %v941
        %v996 = vpack.c.b16 %v944, %v942
        %v997 = vpack.c.b16 %v947, %v945
        %v998 = vpack.c.b16 %v948, %v946
        %v999 = vpack.c.b16 %v951, %v949
        %v1000 = vpack.c.b16 %v952, %v950
        %v1001 = vpack.c.b16 %v955, %v953
        %v1002 = vpack.c.b16 %v956, %v954
        %v1003 = vpack.c.b16 %v959, %v957
        %v1004 = vpack.c.b16 %v960, %v958
        %v1005 = vpack.c.b16 %v963, %v961
        %v1006 = vpack.c.b16 %v964, %v962
        %v1007 = vpack.c.b16 %v967, %v965
        %v1008 = vpack.c.b16 %v968, %v966
        %v1009 = vpack.c.b16 %v971, %v969
        %v1010 = vpack.c.b16 %v972, %v970
        %v1011 = vpack.c.b16 %v975, %v973
        %v1012 = vpack.c.b16 %v976, %v974
        %v1013 = vpack.c.b16 %v979, %v977
        %v1014 = vpack.c.b16 %v980, %v978
        %v1015 = vpack.c.b16 %v983, %v981
        %v1016 = vpack.c.b16 %v984, %v982
        %1049 = vmatpush.bf16.msra.mxu0 %v999
        %1050 = vmatpush.bf16.msra.mxu0 %v997
        %1051 = vmatpush.bf16.msra.mxu0 %v995
        %1052 = vmatpush.bf16.msra.mxu0 %v993
        %1053 = vmatpush.bf16.msra.mxu0 %v991
        %1054 = vmatpush.bf16.msra.mxu0 %v989
        %1055 = vmatpush.bf16.msra.mxu0 %v987
        %1056 = vmatpush.bf16.msra.mxu0 %v985
        %1057 = vmatmul.bf16.gmra.mxu0 %v883
        %v1058 = vpop.f32.mrf.mxu0
        %v1059 = vadd.f32 0.0, %v1058
        %v1060 = vpop.f32.mrf.mxu0
        %v1061 = vadd.f32 0.0, %v1060
        %1062 = vdwg.mxu0
        %1063 = vmatpush.bf16.msra.mxu0 %v1015
        %1064 = vmatpush.bf16.msra.mxu0 %v1013
        %1065 = vmatpush.bf16.msra.mxu0 %v1011
        %1066 = vmatpush.bf16.msra.mxu0 %v1009
        %1067 = vmatpush.bf16.msra.mxu0 %v1007
        %1068 = vmatpush.bf16.msra.mxu0 %v1005
        %1069 = vmatpush.bf16.msra.mxu0 %v1003
        %1070 = vmatpush.bf16.msra.mxu0 %v1001
        %1071 = vmatmul.bf16.gmra.mxu0 %v886
        %v1072 = vpop.f32.mrf.mxu0
        %v1073 = vadd.f32 %v1059, %v1072
        %v1074 = vpop.f32.mrf.mxu0
        %v1075 = vadd.f32 %v1061, %v1074
        %1076 = vdwg.mxu0
        %1077 = vmatpush.bf16.msra.mxu0 %v1000
        %1078 = vmatpush.bf16.msra.mxu0 %v998
        %1079 = vmatpush.bf16.msra.mxu0 %v996
        %1080 = vmatpush.bf16.msra.mxu0 %v994
        %1081 = vmatpush.bf16.msra.mxu0 %v992
        %1082 = vmatpush.bf16.msra.mxu0 %v990
        %1083 = vmatpush.bf16.msra.mxu0 %v988
        %1084 = vmatpush.bf16.msra.mxu0 %v986
        %1085 = vmatmul.bf16.gmra.mxu0 %v883
        %v1086 = vpop.f32.mrf.mxu0
        %v1087 = vadd.f32 0.0, %v1086
        %v1088 = vpop.f32.mrf.mxu0
        %v1089 = vadd.f32 0.0, %v1088
        %1090 = vdwg.mxu0
        %1091 = vmatpush.bf16.msra.mxu0 %v1016
        %1092 = vmatpush.bf16.msra.mxu0 %v1014
        %1093 = vmatpush.bf16.msra.mxu0 %v1012
        %1094 = vmatpush.bf16.msra.mxu0 %v1010
        %1095 = vmatpush.bf16.msra.mxu0 %v1008
        %1096 = vmatpush.bf16.msra.mxu0 %v1006
        %1097 = vmatpush.bf16.msra.mxu0 %v1004
        %1098 = vmatpush.bf16.msra.mxu0 %v1002
        %1099 = vmatmul.bf16.gmra.mxu0 %v886
        %v1100 = vpop.f32.mrf.mxu0
        %v1101 = vadd.f32 %v1087, %v1100
        %v1102 = vpop.f32.mrf.mxu0
        %v1103 = vadd.f32 %v1089, %v1102
        %1104 = vdwg.mxu0
        %v1105 = vadd.f32 %v815, %v1073
        %v1106 = vadd.f32 %v843, %v1101
        %v1107 = vadd.f32 %v817, %v1075
        %v1108 = vadd.f32 %v845, %v1103
        %s1109 = scalar_lea.vmem [#allocation2], 768
        %v1110 = vld [vmem:[%s1109] sm:$0xff]
        %v1111 = vld [vmem:[%s1109 + $0x8] sm:$0xff]
        %v1112 = vld [vmem:[%s1109 + $0x10] sm:$0xff]
        %v1113 = vld [vmem:[%s1109 + $0x18] sm:$0xff]
        %v1114 = vld [vmem:[%s1109 + $0x20] sm:$0xff]
        %v1115 = vld [vmem:[%s1109 + $0x28] sm:$0xff]
        %v1116 = vld [vmem:[%s1109 + $0x30] sm:$0xff]
        %v1117 = vld [vmem:[%s1109 + $0x38] sm:$0xff]
        %v1118 = vld [vmem:[%s1109 + $0x40] sm:$0xff]
        %v1119 = vld [vmem:[%s1109 + $0x48] sm:$0xff]
        %v1120 = vld [vmem:[%s1109 + $0x50] sm:$0xff]
        %v1121 = vld [vmem:[%s1109 + $0x58] sm:$0xff]
        %v1122 = vld [vmem:[%s1109 + $0x60] sm:$0xff]
        %v1123 = vld [vmem:[%s1109 + $0x68] sm:$0xff]
        %v1124 = vld [vmem:[%s1109 + $0x70] sm:$0xff]
        %v1125 = vld [vmem:[%s1109 + $0x78] sm:$0xff]
        %v1126 = vld [vmem:[%s1109 + $0x80] sm:$0xff]
        %v1127 = vld [vmem:[%s1109 + $0x88] sm:$0xff]
        %v1128 = vld [vmem:[%s1109 + $0x90] sm:$0xff]
        %v1129 = vld [vmem:[%s1109 + $0x98] sm:$0xff]
        %v1130 = vld [vmem:[%s1109 + $0xa0] sm:$0xff]
        %v1131 = vld [vmem:[%s1109 + $0xa8] sm:$0xff]
        %v1132 = vld [vmem:[%s1109 + $0xb0] sm:$0xff]
        %v1133 = vld [vmem:[%s1109 + $0xb8] sm:$0xff]
        %v1134 = vld [vmem:[%s1109 + $0xc0] sm:$0xff]
        %v1135 = vld [vmem:[%s1109 + $0xc8] sm:$0xff]
        %v1136 = vld [vmem:[%s1109 + $0xd0] sm:$0xff]
        %v1137 = vld [vmem:[%s1109 + $0xd8] sm:$0xff]
        %v1138 = vld [vmem:[%s1109 + $0xe0] sm:$0xff]
        %v1139 = vld [vmem:[%s1109 + $0xe8] sm:$0xff]
        %v1140 = vld [vmem:[%s1109 + $0xf0] sm:$0xff]
        %v1141 = vld [vmem:[%s1109 + $0xf8] sm:$0xff]
        %vm1142 = vsmask.f32 6400
        %v1143 = vrot.slane %v390, 1
        %v1144 = vrot.slane %v392, 2
        %v1145 = vor.u32 %v1143, %v1144
        %v1146 = vshrl.u32 %v321, 16
        %v1148 = vrot.slane %v1146, 1
        %v1149 = vrot.slane %v397, 2
        %v1150 = vor.u32 %v1148, %v1149
        %v1151 = vsel %vm1142, %v1145, %v1150
        %v1152 = vrot.slane %v402, 1
        %v1153 = vrot.slane %v404, 2
        %v1154 = vor.u32 %v1152, %v1153
        %v1155 = vshrl.u32 %v322, 16
        %v1157 = vrot.slane %v1155, 1
        %v1158 = vrot.slane %v409, 2
        %v1159 = vor.u32 %v1157, %v1158
        %v1160 = vsel %vm1142, %v1154, %v1159
        %v1195 = vunpack.c.l.b16 %v1110
        %v1196 = vunpack.c.h.b16 %v1110
        %v1197 = vunpack.c.l.b16 %v1111
        %v1198 = vunpack.c.h.b16 %v1111
        %v1199 = vunpack.c.l.b16 %v1112
        %v1200 = vunpack.c.h.b16 %v1112
        %v1201 = vunpack.c.l.b16 %v1113
        %v1202 = vunpack.c.h.b16 %v1113
        %v1203 = vunpack.c.l.b16 %v1114
        %v1204 = vunpack.c.h.b16 %v1114
        %v1205 = vunpack.c.l.b16 %v1115
        %v1206 = vunpack.c.h.b16 %v1115
        %v1207 = vunpack.c.l.b16 %v1116
        %v1208 = vunpack.c.h.b16 %v1116
        %v1209 = vunpack.c.l.b16 %v1117
        %v1210 = vunpack.c.h.b16 %v1117
        %v1211 = vunpack.c.l.b16 %v1118
        %v1212 = vunpack.c.h.b16 %v1118
        %v1213 = vunpack.c.l.b16 %v1119
        %v1214 = vunpack.c.h.b16 %v1119
        %v1215 = vunpack.c.l.b16 %v1120
        %v1216 = vunpack.c.h.b16 %v1120
        %v1217 = vunpack.c.l.b16 %v1121
        %v1218 = vunpack.c.h.b16 %v1121
        %v1219 = vunpack.c.l.b16 %v1122
        %v1220 = vunpack.c.h.b16 %v1122
        %v1221 = vunpack.c.l.b16 %v1123
        %v1222 = vunpack.c.h.b16 %v1123
        %v1223 = vunpack.c.l.b16 %v1124
        %v1224 = vunpack.c.h.b16 %v1124
        %v1225 = vunpack.c.l.b16 %v1125
        %v1226 = vunpack.c.h.b16 %v1125
        %v1227 = vunpack.c.l.b16 %v1126
        %v1228 = vunpack.c.h.b16 %v1126
        %v1229 = vunpack.c.l.b16 %v1127
        %v1230 = vunpack.c.h.b16 %v1127
        %v1231 = vunpack.c.l.b16 %v1128
        %v1232 = vunpack.c.h.b16 %v1128
        %v1233 = vunpack.c.l.b16 %v1129
        %v1234 = vunpack.c.h.b16 %v1129
        %v1235 = vunpack.c.l.b16 %v1130
        %v1236 = vunpack.c.h.b16 %v1130
        %v1237 = vunpack.c.l.b16 %v1131
        %v1238 = vunpack.c.h.b16 %v1131
        %v1239 = vunpack.c.l.b16 %v1132
        %v1240 = vunpack.c.h.b16 %v1132
        %v1241 = vunpack.c.l.b16 %v1133
        %v1242 = vunpack.c.h.b16 %v1133
        %v1243 = vunpack.c.l.b16 %v1134
        %v1244 = vunpack.c.h.b16 %v1134
        %v1245 = vunpack.c.l.b16 %v1135
        %v1246 = vunpack.c.h.b16 %v1135
        %v1247 = vunpack.c.l.b16 %v1136
        %v1248 = vunpack.c.h.b16 %v1136
        %v1249 = vunpack.c.l.b16 %v1137
        %v1250 = vunpack.c.h.b16 %v1137
        %v1251 = vunpack.c.l.b16 %v1138
        %v1252 = vunpack.c.h.b16 %v1138
        %v1253 = vunpack.c.l.b16 %v1139
        %v1254 = vunpack.c.h.b16 %v1139
        %v1255 = vunpack.c.l.b16 %v1140
        %v1256 = vunpack.c.h.b16 %v1140
        %v1257 = vunpack.c.l.b16 %v1141
        %v1258 = vunpack.c.h.b16 %v1141
        %v1259 = vpack.c.b16 %v1197, %v1195
        %v1260 = vpack.c.b16 %v1198, %v1196
        %v1261 = vpack.c.b16 %v1201, %v1199
        %v1262 = vpack.c.b16 %v1202, %v1200
        %v1263 = vpack.c.b16 %v1205, %v1203
        %v1264 = vpack.c.b16 %v1206, %v1204
        %v1265 = vpack.c.b16 %v1209, %v1207
        %v1266 = vpack.c.b16 %v1210, %v1208
        %v1267 = vpack.c.b16 %v1213, %v1211
        %v1268 = vpack.c.b16 %v1214, %v1212
        %v1269 = vpack.c.b16 %v1217, %v1215
        %v1270 = vpack.c.b16 %v1218, %v1216
        %v1271 = vpack.c.b16 %v1221, %v1219
        %v1272 = vpack.c.b16 %v1222, %v1220
        %v1273 = vpack.c.b16 %v1225, %v1223
        %v1274 = vpack.c.b16 %v1226, %v1224
        %v1275 = vpack.c.b16 %v1229, %v1227
        %v1276 = vpack.c.b16 %v1230, %v1228
        %v1277 = vpack.c.b16 %v1233, %v1231
        %v1278 = vpack.c.b16 %v1234, %v1232
        %v1279 = vpack.c.b16 %v1237, %v1235
        %v1280 = vpack.c.b16 %v1238, %v1236
        %v1281 = vpack.c.b16 %v1241, %v1239
        %v1282 = vpack.c.b16 %v1242, %v1240
        %v1283 = vpack.c.b16 %v1245, %v1243
        %v1284 = vpack.c.b16 %v1246, %v1244
        %v1285 = vpack.c.b16 %v1249, %v1247
        %v1286 = vpack.c.b16 %v1250, %v1248
        %v1287 = vpack.c.b16 %v1253, %v1251
        %v1288 = vpack.c.b16 %v1254, %v1252
        %v1289 = vpack.c.b16 %v1257, %v1255
        %v1290 = vpack.c.b16 %v1258, %v1256
        %1323 = vmatpush.bf16.msra.mxu0 %v1273
        %1324 = vmatpush.bf16.msra.mxu0 %v1271
        %1325 = vmatpush.bf16.msra.mxu0 %v1269
        %1326 = vmatpush.bf16.msra.mxu0 %v1267
        %1327 = vmatpush.bf16.msra.mxu0 %v1265
        %1328 = vmatpush.bf16.msra.mxu0 %v1263
        %1329 = vmatpush.bf16.msra.mxu0 %v1261
        %1330 = vmatpush.bf16.msra.mxu0 %v1259
        %1331 = vmatmul.bf16.gmra.mxu0 %v1151
        %v1332 = vpop.f32.mrf.mxu0
        %v1333 = vadd.f32 0.0, %v1332
        %v1334 = vpop.f32.mrf.mxu0
        %v1335 = vadd.f32 0.0, %v1334
        %1336 = vdwg.mxu0
        %1337 = vmatpush.bf16.msra.mxu0 %v1289
        %1338 = vmatpush.bf16.msra.mxu0 %v1287
        %1339 = vmatpush.bf16.msra.mxu0 %v1285
        %1340 = vmatpush.bf16.msra.mxu0 %v1283
        %1341 = vmatpush.bf16.msra.mxu0 %v1281
        %1342 = vmatpush.bf16.msra.mxu0 %v1279
        %1343 = vmatpush.bf16.msra.mxu0 %v1277
        %1344 = vmatpush.bf16.msra.mxu0 %v1275
        %1345 = vmatmul.bf16.gmra.mxu0 %v1160
        %v1346 = vpop.f32.mrf.mxu0
        %v1347 = vadd.f32 %v1333, %v1346
        %v1348 = vpop.f32.mrf.mxu0
        %v1349 = vadd.f32 %v1335, %v1348
        %1350 = vdwg.mxu0
        %1351 = vmatpush.bf16.msra.mxu0 %v1274
        %1352 = vmatpush.bf16.msra.mxu0 %v1272
        %1353 = vmatpush.bf16.msra.mxu0 %v1270
        %1354 = vmatpush.bf16.msra.mxu0 %v1268
        %1355 = vmatpush.bf16.msra.mxu0 %v1266
        %1356 = vmatpush.bf16.msra.mxu0 %v1264
        %1357 = vmatpush.bf16.msra.mxu0 %v1262
        %1358 = vmatpush.bf16.msra.mxu0 %v1260
        %1359 = vmatmul.bf16.gmra.mxu0 %v1151
        %v1360 = vpop.f32.mrf.mxu0
        %v1361 = vadd.f32 0.0, %v1360
        %v1362 = vpop.f32.mrf.mxu0
        %v1363 = vadd.f32 0.0, %v1362
        %1364 = vdwg.mxu0
        %1365 = vmatpush.bf16.msra.mxu0 %v1290
        %1366 = vmatpush.bf16.msra.mxu0 %v1288
        %1367 = vmatpush.bf16.msra.mxu0 %v1286
        %1368 = vmatpush.bf16.msra.mxu0 %v1284
        %1369 = vmatpush.bf16.msra.mxu0 %v1282
        %1370 = vmatpush.bf16.msra.mxu0 %v1280
        %1371 = vmatpush.bf16.msra.mxu0 %v1278
        %1372 = vmatpush.bf16.msra.mxu0 %v1276
        %1373 = vmatmul.bf16.gmra.mxu0 %v1160
        %v1374 = vpop.f32.mrf.mxu0
        %v1375 = vadd.f32 %v1361, %v1374
        %v1376 = vpop.f32.mrf.mxu0
        %v1377 = vadd.f32 %v1363, %v1376
        %1378 = vdwg.mxu0
        %v1379 = vadd.f32 %v1105, %v1347
        %v1380 = vadd.f32 %v1106, %v1375
        %v1381 = vadd.f32 %v1107, %v1349
        %v1382 = vadd.f32 %v1108, %v1377
        %s1383 = scalar_lea.vmem [#allocation2], 1024
        %v1384 = vld [vmem:[%s1383] sm:$0xff]
        %v1385 = vld [vmem:[%s1383 + $0x8] sm:$0xff]
        %v1386 = vld [vmem:[%s1383 + $0x10] sm:$0xff]
        %v1387 = vld [vmem:[%s1383 + $0x18] sm:$0xff]
        %v1388 = vld [vmem:[%s1383 + $0x20] sm:$0xff]
        %v1389 = vld [vmem:[%s1383 + $0x28] sm:$0xff]
        %v1390 = vld [vmem:[%s1383 + $0x30] sm:$0xff]
        %v1391 = vld [vmem:[%s1383 + $0x38] sm:$0xff]
        %v1392 = vld [vmem:[%s1383 + $0x40] sm:$0xff]
        %v1393 = vld [vmem:[%s1383 + $0x48] sm:$0xff]
        %v1394 = vld [vmem:[%s1383 + $0x50] sm:$0xff]
        %v1395 = vld [vmem:[%s1383 + $0x58] sm:$0xff]
        %v1396 = vld [vmem:[%s1383 + $0x60] sm:$0xff]
        %v1397 = vld [vmem:[%s1383 + $0x68] sm:$0xff]
        %v1398 = vld [vmem:[%s1383 + $0x70] sm:$0xff]
        %v1399 = vld [vmem:[%s1383 + $0x78] sm:$0xff]
        %v1400 = vld [vmem:[%s1383 + $0x80] sm:$0xff]
        %v1401 = vld [vmem:[%s1383 + $0x88] sm:$0xff]
        %v1402 = vld [vmem:[%s1383 + $0x90] sm:$0xff]
        %v1403 = vld [vmem:[%s1383 + $0x98] sm:$0xff]
        %v1404 = vld [vmem:[%s1383 + $0xa0] sm:$0xff]
        %v1405 = vld [vmem:[%s1383 + $0xa8] sm:$0xff]
        %v1406 = vld [vmem:[%s1383 + $0xb0] sm:$0xff]
        %v1407 = vld [vmem:[%s1383 + $0xb8] sm:$0xff]
        %v1408 = vld [vmem:[%s1383 + $0xc0] sm:$0xff]
        %v1409 = vld [vmem:[%s1383 + $0xc8] sm:$0xff]
        %v1410 = vld [vmem:[%s1383 + $0xd0] sm:$0xff]
        %v1411 = vld [vmem:[%s1383 + $0xd8] sm:$0xff]
        %v1412 = vld [vmem:[%s1383 + $0xe0] sm:$0xff]
        %v1413 = vld [vmem:[%s1383 + $0xe8] sm:$0xff]
        %v1414 = vld [vmem:[%s1383 + $0xf0] sm:$0xff]
        %v1415 = vld [vmem:[%s1383 + $0xf8] sm:$0xff]
        %vm1416 = vcmask 1045504
        %v1417 = vrot.slane %v314, 2
        %v1418 = vrot.slane %v321, 2
        %v1419 = vsel %vm1416, %v1417, %v1418
        %v1420 = vrot.slane %v315, 2
        %v1421 = vrot.slane %v322, 2
        %v1422 = vsel %vm1416, %v1420, %v1421
        %v1457 = vunpack.c.l.b16 %v1384
        %v1458 = vunpack.c.h.b16 %v1384
        %v1459 = vunpack.c.l.b16 %v1385
        %v1460 = vunpack.c.h.b16 %v1385
        %v1461 = vunpack.c.l.b16 %v1386
        %v1462 = vunpack.c.h.b16 %v1386
        %v1463 = vunpack.c.l.b16 %v1387
        %v1464 = vunpack.c.h.b16 %v1387
        %v1465 = vunpack.c.l.b16 %v1388
        %v1466 = vunpack.c.h.b16 %v1388
        %v1467 = vunpack.c.l.b16 %v1389
        %v1468 = vunpack.c.h.b16 %v1389
        %v1469 = vunpack.c.l.b16 %v1390
        %v1470 = vunpack.c.h.b16 %v1390
        %v1471 = vunpack.c.l.b16 %v1391
        %v1472 = vunpack.c.h.b16 %v1391
        %v1473 = vunpack.c.l.b16 %v1392
        %v1474 = vunpack.c.h.b16 %v1392
        %v1475 = vunpack.c.l.b16 %v1393
        %v1476 = vunpack.c.h.b16 %v1393
        %v1477 = vunpack.c.l.b16 %v1394
        %v1478 = vunpack.c.h.b16 %v1394
        %v1479 = vunpack.c.l.b16 %v1395
        %v1480 = vunpack.c.h.b16 %v1395
        %v1481 = vunpack.c.l.b16 %v1396
        %v1482 = vunpack.c.h.b16 %v1396
        %v1483 = vunpack.c.l.b16 %v1397
        %v1484 = vunpack.c.h.b16 %v1397
        %v1485 = vunpack.c.l.b16 %v1398
        %v1486 = vunpack.c.h.b16 %v1398
        %v1487 = vunpack.c.l.b16 %v1399
        %v1488 = vunpack.c.h.b16 %v1399
        %v1489 = vunpack.c.l.b16 %v1400
        %v1490 = vunpack.c.h.b16 %v1400
        %v1491 = vunpack.c.l.b16 %v1401
        %v1492 = vunpack.c.h.b16 %v1401
        %v1493 = vunpack.c.l.b16 %v1402
        %v1494 = vunpack.c.h.b16 %v1402
        %v1495 = vunpack.c.l.b16 %v1403
        %v1496 = vunpack.c.h.b16 %v1403
        %v1497 = vunpack.c.l.b16 %v1404
        %v1498 = vunpack.c.h.b16 %v1404
        %v1499 = vunpack.c.l.b16 %v1405
        %v1500 = vunpack.c.h.b16 %v1405
        %v1501 = vunpack.c.l.b16 %v1406
        %v1502 = vunpack.c.h.b16 %v1406
        %v1503 = vunpack.c.l.b16 %v1407
        %v1504 = vunpack.c.h.b16 %v1407
        %v1505 = vunpack.c.l.b16 %v1408
        %v1506 = vunpack.c.h.b16 %v1408
        %v1507 = vunpack.c.l.b16 %v1409
        %v1508 = vunpack.c.h.b16 %v1409
        %v1509 = vunpack.c.l.b16 %v1410
        %v1510 = vunpack.c.h.b16 %v1410
        %v1511 = vunpack.c.l.b16 %v1411
        %v1512 = vunpack.c.h.b16 %v1411
        %v1513 = vunpack.c.l.b16 %v1412
        %v1514 = vunpack.c.h.b16 %v1412
        %v1515 = vunpack.c.l.b16 %v1413
        %v1516 = vunpack.c.h.b16 %v1413
        %v1517 = vunpack.c.l.b16 %v1414
        %v1518 = vunpack.c.h.b16 %v1414
        %v1519 = vunpack.c.l.b16 %v1415
        %v1520 = vunpack.c.h.b16 %v1415
        %v1521 = vpack.c.b16 %v1459, %v1457
        %v1522 = vpack.c.b16 %v1460, %v1458
        %v1523 = vpack.c.b16 %v1463, %v1461
        %v1524 = vpack.c.b16 %v1464, %v1462
        %v1525 = vpack.c.b16 %v1467, %v1465
        %v1526 = vpack.c.b16 %v1468, %v1466
        %v1527 = vpack.c.b16 %v1471, %v1469
        %v1528 = vpack.c.b16 %v1472, %v1470
        %v1529 = vpack.c.b16 %v1475, %v1473
        %v1530 = vpack.c.b16 %v1476, %v1474
        %v1531 = vpack.c.b16 %v1479, %v1477
        %v1532 = vpack.c.b16 %v1480, %v1478
        %v1533 = vpack.c.b16 %v1483, %v1481
        %v1534 = vpack.c.b16 %v1484, %v1482
        %v1535 = vpack.c.b16 %v1487, %v1485
        %v1536 = vpack.c.b16 %v1488, %v1486
        %v1537 = vpack.c.b16 %v1491, %v1489
        %v1538 = vpack.c.b16 %v1492, %v1490
        %v1539 = vpack.c.b16 %v1495, %v1493
        %v1540 = vpack.c.b16 %v1496, %v1494
        %v1541 = vpack.c.b16 %v1499, %v1497
        %v1542 = vpack.c.b16 %v1500, %v1498
        %v1543 = vpack.c.b16 %v1503, %v1501
        %v1544 = vpack.c.b16 %v1504, %v1502
        %v1545 = vpack.c.b16 %v1507, %v1505
        %v1546 = vpack.c.b16 %v1508, %v1506
        %v1547 = vpack.c.b16 %v1511, %v1509
        %v1548 = vpack.c.b16 %v1512, %v1510
        %v1549 = vpack.c.b16 %v1515, %v1513
        %v1550 = vpack.c.b16 %v1516, %v1514
        %v1551 = vpack.c.b16 %v1519, %v1517
        %v1552 = vpack.c.b16 %v1520, %v1518
        %1585 = vmatpush.bf16.msra.mxu0 %v1535
        %1586 = vmatpush.bf16.msra.mxu0 %v1533
        %1587 = vmatpush.bf16.msra.mxu0 %v1531
        %1588 = vmatpush.bf16.msra.mxu0 %v1529
        %1589 = vmatpush.bf16.msra.mxu0 %v1527
        %1590 = vmatpush.bf16.msra.mxu0 %v1525
        %1591 = vmatpush.bf16.msra.mxu0 %v1523
        %1592 = vmatpush.bf16.msra.mxu0 %v1521
        %1593 = vmatmul.bf16.gmra.mxu0 %v1419
        %v1594 = vpop.f32.mrf.mxu0
        %v1595 = vadd.f32 0.0, %v1594
        %v1596 = vpop.f32.mrf.mxu0
        %v1597 = vadd.f32 0.0, %v1596
        %1598 = vdwg.mxu0
        %1599 = vmatpush.bf16.msra.mxu0 %v1551
        %1600 = vmatpush.bf16.msra.mxu0 %v1549
        %1601 = vmatpush.bf16.msra.mxu0 %v1547
        %1602 = vmatpush.bf16.msra.mxu0 %v1545
        %1603 = vmatpush.bf16.msra.mxu0 %v1543
        %1604 = vmatpush.bf16.msra.mxu0 %v1541
        %1605 = vmatpush.bf16.msra.mxu0 %v1539
        %1606 = vmatpush.bf16.msra.mxu0 %v1537
        %1607 = vmatmul.bf16.gmra.mxu0 %v1422
        %v1608 = vpop.f32.mrf.mxu0
        %v1609 = vadd.f32 %v1595, %v1608
        %v1610 = vpop.f32.mrf.mxu0
        %v1611 = vadd.f32 %v1597, %v1610
        %1612 = vdwg.mxu0
        %1613 = vmatpush.bf16.msra.mxu0 %v1536
        %1614 = vmatpush.bf16.msra.mxu0 %v1534
        %1615 = vmatpush.bf16.msra.mxu0 %v1532
        %1616 = vmatpush.bf16.msra.mxu0 %v1530
        %1617 = vmatpush.bf16.msra.mxu0 %v1528
        %1618 = vmatpush.bf16.msra.mxu0 %v1526
        %1619 = vmatpush.bf16.msra.mxu0 %v1524
        %1620 = vmatpush.bf16.msra.mxu0 %v1522
        %1621 = vmatmul.bf16.gmra.mxu0 %v1419
        %v1622 = vpop.f32.mrf.mxu0
        %v1623 = vadd.f32 0.0, %v1622
        %v1624 = vpop.f32.mrf.mxu0
        %v1625 = vadd.f32 0.0, %v1624
        %1626 = vdwg.mxu0
        %1627 = vmatpush.bf16.msra.mxu0 %v1552
        %1628 = vmatpush.bf16.msra.mxu0 %v1550
        %1629 = vmatpush.bf16.msra.mxu0 %v1548
        %1630 = vmatpush.bf16.msra.mxu0 %v1546
        %1631 = vmatpush.bf16.msra.mxu0 %v1544
        %1632 = vmatpush.bf16.msra.mxu0 %v1542
        %1633 = vmatpush.bf16.msra.mxu0 %v1540
        %1634 = vmatpush.bf16.msra.mxu0 %v1538
        %1635 = vmatmul.bf16.gmra.mxu0 %v1422
        %v1636 = vpop.f32.mrf.mxu0
        %v1637 = vadd.f32 %v1623, %v1636
        %v1638 = vpop.f32.mrf.mxu0
        %v1639 = vadd.f32 %v1625, %v1638
        %1640 = vdwg.mxu0
        %v1641 = vadd.f32 %v1379, %v1609
        %v1642 = vadd.f32 %v1380, %v1637
        %v1643 = vadd.f32 %v1381, %v1611
        %v1644 = vadd.f32 %v1382, %v1639
        %s1645 = scalar_lea.vmem [#allocation2], 1280
        %v1646 = vld [vmem:[%s1645] sm:$0xff]
        %v1647 = vld [vmem:[%s1645 + $0x8] sm:$0xff]
        %v1648 = vld [vmem:[%s1645 + $0x10] sm:$0xff]
        %v1649 = vld [vmem:[%s1645 + $0x18] sm:$0xff]
        %v1650 = vld [vmem:[%s1645 + $0x20] sm:$0xff]
        %v1651 = vld [vmem:[%s1645 + $0x28] sm:$0xff]
        %v1652 = vld [vmem:[%s1645 + $0x30] sm:$0xff]
        %v1653 = vld [vmem:[%s1645 + $0x38] sm:$0xff]
        %v1654 = vld [vmem:[%s1645 + $0x40] sm:$0xff]
        %v1655 = vld [vmem:[%s1645 + $0x48] sm:$0xff]
        %v1656 = vld [vmem:[%s1645 + $0x50] sm:$0xff]
        %v1657 = vld [vmem:[%s1645 + $0x58] sm:$0xff]
        %v1658 = vld [vmem:[%s1645 + $0x60] sm:$0xff]
        %v1659 = vld [vmem:[%s1645 + $0x68] sm:$0xff]
        %v1660 = vld [vmem:[%s1645 + $0x70] sm:$0xff]
        %v1661 = vld [vmem:[%s1645 + $0x78] sm:$0xff]
        %v1662 = vld [vmem:[%s1645 + $0x80] sm:$0xff]
        %v1663 = vld [vmem:[%s1645 + $0x88] sm:$0xff]
        %v1664 = vld [vmem:[%s1645 + $0x90] sm:$0xff]
        %v1665 = vld [vmem:[%s1645 + $0x98] sm:$0xff]
        %v1666 = vld [vmem:[%s1645 + $0xa0] sm:$0xff]
        %v1667 = vld [vmem:[%s1645 + $0xa8] sm:$0xff]
        %v1668 = vld [vmem:[%s1645 + $0xb0] sm:$0xff]
        %v1669 = vld [vmem:[%s1645 + $0xb8] sm:$0xff]
        %v1670 = vld [vmem:[%s1645 + $0xc0] sm:$0xff]
        %v1671 = vld [vmem:[%s1645 + $0xc8] sm:$0xff]
        %v1672 = vld [vmem:[%s1645 + $0xd0] sm:$0xff]
        %v1673 = vld [vmem:[%s1645 + $0xd8] sm:$0xff]
        %v1674 = vld [vmem:[%s1645 + $0xe0] sm:$0xff]
        %v1675 = vld [vmem:[%s1645 + $0xe8] sm:$0xff]
        %v1676 = vld [vmem:[%s1645 + $0xf0] sm:$0xff]
        %v1677 = vld [vmem:[%s1645 + $0xf8] sm:$0xff]
        %vm1678 = vsmask.f32 5376
        %v1679 = vrot.slane %v390, 2
        %v1680 = vrot.slane %v392, 3
        %v1681 = vor.u32 %v1679, %v1680
        %v1682 = vrot.slane %v1146, 2
        %v1683 = vrot.slane %v397, 3
        %v1684 = vor.u32 %v1682, %v1683
        %v1685 = vsel %vm1678, %v1681, %v1684
        %v1686 = vrot.slane %v402, 2
        %v1687 = vrot.slane %v404, 3
        %v1688 = vor.u32 %v1686, %v1687
        %v1689 = vrot.slane %v1155, 2
        %v1690 = vrot.slane %v409, 3
        %v1691 = vor.u32 %v1689, %v1690
        %v1692 = vsel %vm1678, %v1688, %v1691
        %v1727 = vunpack.c.l.b16 %v1646
        %v1728 = vunpack.c.h.b16 %v1646
        %v1729 = vunpack.c.l.b16 %v1647
        %v1730 = vunpack.c.h.b16 %v1647
        %v1731 = vunpack.c.l.b16 %v1648
        %v1732 = vunpack.c.h.b16 %v1648
        %v1733 = vunpack.c.l.b16 %v1649
        %v1734 = vunpack.c.h.b16 %v1649
        %v1735 = vunpack.c.l.b16 %v1650
        %v1736 = vunpack.c.h.b16 %v1650
        %v1737 = vunpack.c.l.b16 %v1651
        %v1738 = vunpack.c.h.b16 %v1651
        %v1739 = vunpack.c.l.b16 %v1652
        %v1740 = vunpack.c.h.b16 %v1652
        %v1741 = vunpack.c.l.b16 %v1653
        %v1742 = vunpack.c.h.b16 %v1653
        %v1743 = vunpack.c.l.b16 %v1654
        %v1744 = vunpack.c.h.b16 %v1654
        %v1745 = vunpack.c.l.b16 %v1655
        %v1746 = vunpack.c.h.b16 %v1655
        %v1747 = vunpack.c.l.b16 %v1656
        %v1748 = vunpack.c.h.b16 %v1656
        %v1749 = vunpack.c.l.b16 %v1657
        %v1750 = vunpack.c.h.b16 %v1657
        %v1751 = vunpack.c.l.b16 %v1658
        %v1752 = vunpack.c.h.b16 %v1658
        %v1753 = vunpack.c.l.b16 %v1659
        %v1754 = vunpack.c.h.b16 %v1659
        %v1755 = vunpack.c.l.b16 %v1660
        %v1756 = vunpack.c.h.b16 %v1660
        %v1757 = vunpack.c.l.b16 %v1661
        %v1758 = vunpack.c.h.b16 %v1661
        %v1759 = vunpack.c.l.b16 %v1662
        %v1760 = vunpack.c.h.b16 %v1662
        %v1761 = vunpack.c.l.b16 %v1663
        %v1762 = vunpack.c.h.b16 %v1663
        %v1763 = vunpack.c.l.b16 %v1664
        %v1764 = vunpack.c.h.b16 %v1664
        %v1765 = vunpack.c.l.b16 %v1665
        %v1766 = vunpack.c.h.b16 %v1665
        %v1767 = vunpack.c.l.b16 %v1666
        %v1768 = vunpack.c.h.b16 %v1666
        %v1769 = vunpack.c.l.b16 %v1667
        %v1770 = vunpack.c.h.b16 %v1667
        %v1771 = vunpack.c.l.b16 %v1668
        %v1772 = vunpack.c.h.b16 %v1668
        %v1773 = vunpack.c.l.b16 %v1669
        %v1774 = vunpack.c.h.b16 %v1669
        %v1775 = vunpack.c.l.b16 %v1670
        %v1776 = vunpack.c.h.b16 %v1670
        %v1777 = vunpack.c.l.b16 %v1671
        %v1778 = vunpack.c.h.b16 %v1671
        %v1779 = vunpack.c.l.b16 %v1672
        %v1780 = vunpack.c.h.b16 %v1672
        %v1781 = vunpack.c.l.b16 %v1673
        %v1782 = vunpack.c.h.b16 %v1673
        %v1783 = vunpack.c.l.b16 %v1674
        %v1784 = vunpack.c.h.b16 %v1674
        %v1785 = vunpack.c.l.b16 %v1675
        %v1786 = vunpack.c.h.b16 %v1675
        %v1787 = vunpack.c.l.b16 %v1676
        %v1788 = vunpack.c.h.b16 %v1676
        %v1789 = vunpack.c.l.b16 %v1677
        %v1790 = vunpack.c.h.b16 %v1677
        %v1791 = vpack.c.b16 %v1729, %v1727
        %v1792 = vpack.c.b16 %v1730, %v1728
        %v1793 = vpack.c.b16 %v1733, %v1731
        %v1794 = vpack.c.b16 %v1734, %v1732
        %v1795 = vpack.c.b16 %v1737, %v1735
        %v1796 = vpack.c.b16 %v1738, %v1736
        %v1797 = vpack.c.b16 %v1741, %v1739
        %v1798 = vpack.c.b16 %v1742, %v1740
        %v1799 = vpack.c.b16 %v1745, %v1743
        %v1800 = vpack.c.b16 %v1746, %v1744
        %v1801 = vpack.c.b16 %v1749, %v1747
        %v1802 = vpack.c.b16 %v1750, %v1748
        %v1803 = vpack.c.b16 %v1753, %v1751
        %v1804 = vpack.c.b16 %v1754, %v1752
        %v1805 = vpack.c.b16 %v1757, %v1755
        %v1806 = vpack.c.b16 %v1758, %v1756
        %v1807 = vpack.c.b16 %v1761, %v1759
        %v1808 = vpack.c.b16 %v1762, %v1760
        %v1809 = vpack.c.b16 %v1765, %v1763
        %v1810 = vpack.c.b16 %v1766, %v1764
        %v1811 = vpack.c.b16 %v1769, %v1767
        %v1812 = vpack.c.b16 %v1770, %v1768
        %v1813 = vpack.c.b16 %v1773, %v1771
        %v1814 = vpack.c.b16 %v1774, %v1772
        %v1815 = vpack.c.b16 %v1777, %v1775
        %v1816 = vpack.c.b16 %v1778, %v1776
        %v1817 = vpack.c.b16 %v1781, %v1779
        %v1818 = vpack.c.b16 %v1782, %v1780
        %v1819 = vpack.c.b16 %v1785, %v1783
        %v1820 = vpack.c.b16 %v1786, %v1784
        %v1821 = vpack.c.b16 %v1789, %v1787
        %v1822 = vpack.c.b16 %v1790, %v1788
        %1855 = vmatpush.bf16.msra.mxu0 %v1805
        %1856 = vmatpush.bf16.msra.mxu0 %v1803
        %1857 = vmatpush.bf16.msra.mxu0 %v1801
        %1858 = vmatpush.bf16.msra.mxu0 %v1799
        %1859 = vmatpush.bf16.msra.mxu0 %v1797
        %1860 = vmatpush.bf16.msra.mxu0 %v1795
        %1861 = vmatpush.bf16.msra.mxu0 %v1793
        %1862 = vmatpush.bf16.msra.mxu0 %v1791
        %1863 = vmatmul.bf16.gmra.mxu0 %v1685
        %v1864 = vpop.f32.mrf.mxu0
        %v1865 = vadd.f32 0.0, %v1864
        %v1866 = vpop.f32.mrf.mxu0
        %v1867 = vadd.f32 0.0, %v1866
        %1868 = vdwg.mxu0
        %1869 = vmatpush.bf16.msra.mxu0 %v1821
        %1870 = vmatpush.bf16.msra.mxu0 %v1819
        %1871 = vmatpush.bf16.msra.mxu0 %v1817
        %1872 = vmatpush.bf16.msra.mxu0 %v1815
        %1873 = vmatpush.bf16.msra.mxu0 %v1813
        %1874 = vmatpush.bf16.msra.mxu0 %v1811
        %1875 = vmatpush.bf16.msra.mxu0 %v1809
        %1876 = vmatpush.bf16.msra.mxu0 %v1807
        %1877 = vmatmul.bf16.gmra.mxu0 %v1692
        %v1878 = vpop.f32.mrf.mxu0
        %v1879 = vadd.f32 %v1865, %v1878
        %v1880 = vpop.f32.mrf.mxu0
        %v1881 = vadd.f32 %v1867, %v1880
        %1882 = vdwg.mxu0
        %1883 = vmatpush.bf16.msra.mxu0 %v1806
        %1884 = vmatpush.bf16.msra.mxu0 %v1804
        %1885 = vmatpush.bf16.msra.mxu0 %v1802
        %1886 = vmatpush.bf16.msra.mxu0 %v1800
        %1887 = vmatpush.bf16.msra.mxu0 %v1798
        %1888 = vmatpush.bf16.msra.mxu0 %v1796
        %1889 = vmatpush.bf16.msra.mxu0 %v1794
        %1890 = vmatpush.bf16.msra.mxu0 %v1792
        %1891 = vmatmul.bf16.gmra.mxu0 %v1685
        %v1892 = vpop.f32.mrf.mxu0
        %v1893 = vadd.f32 0.0, %v1892
        %v1894 = vpop.f32.mrf.mxu0
        %v1895 = vadd.f32 0.0, %v1894
        %1896 = vdwg.mxu0
        %1897 = vmatpush.bf16.msra.mxu0 %v1822
        %1898 = vmatpush.bf16.msra.mxu0 %v1820
        %1899 = vmatpush.bf16.msra.mxu0 %v1818
        %1900 = vmatpush.bf16.msra.mxu0 %v1816
        %1901 = vmatpush.bf16.msra.mxu0 %v1814
        %1902 = vmatpush.bf16.msra.mxu0 %v1812
        %1903 = vmatpush.bf16.msra.mxu0 %v1810
        %1904 = vmatpush.bf16.msra.mxu0 %v1808
        %1905 = vmatmul.bf16.gmra.mxu0 %v1692
        %v1906 = vpop.f32.mrf.mxu0
        %v1907 = vadd.f32 %v1893, %v1906
        %v1908 = vpop.f32.mrf.mxu0
        %v1909 = vadd.f32 %v1895, %v1908
        %1910 = vdwg.mxu0
        %v1911 = vadd.f32 %v1641, %v1879
        %v1912 = vadd.f32 %v1642, %v1907
        %v1913 = vadd.f32 %v1643, %v1881
        %v1914 = vadd.f32 %v1644, %v1909
        %s1915 = scalar_lea.vmem [#allocation2], 1536
        %v1916 = vld [vmem:[%s1915] sm:$0xff]
        %v1917 = vld [vmem:[%s1915 + $0x8] sm:$0xff]
        %v1918 = vld [vmem:[%s1915 + $0x10] sm:$0xff]
        %v1919 = vld [vmem:[%s1915 + $0x18] sm:$0xff]
        %v1920 = vld [vmem:[%s1915 + $0x20] sm:$0xff]
        %v1921 = vld [vmem:[%s1915 + $0x28] sm:$0xff]
        %v1922 = vld [vmem:[%s1915 + $0x30] sm:$0xff]
        %v1923 = vld [vmem:[%s1915 + $0x38] sm:$0xff]
        %v1924 = vld [vmem:[%s1915 + $0x40] sm:$0xff]
        %v1925 = vld [vmem:[%s1915 + $0x48] sm:$0xff]
        %v1926 = vld [vmem:[%s1915 + $0x50] sm:$0xff]
        %v1927 = vld [vmem:[%s1915 + $0x58] sm:$0xff]
        %v1928 = vld [vmem:[%s1915 + $0x60] sm:$0xff]
        %v1929 = vld [vmem:[%s1915 + $0x68] sm:$0xff]
        %v1930 = vld [vmem:[%s1915 + $0x70] sm:$0xff]
        %v1931 = vld [vmem:[%s1915 + $0x78] sm:$0xff]
        %v1932 = vld [vmem:[%s1915 + $0x80] sm:$0xff]
        %v1933 = vld [vmem:[%s1915 + $0x88] sm:$0xff]
        %v1934 = vld [vmem:[%s1915 + $0x90] sm:$0xff]
        %v1935 = vld [vmem:[%s1915 + $0x98] sm:$0xff]
        %v1936 = vld [vmem:[%s1915 + $0xa0] sm:$0xff]
        %v1937 = vld [vmem:[%s1915 + $0xa8] sm:$0xff]
        %v1938 = vld [vmem:[%s1915 + $0xb0] sm:$0xff]
        %v1939 = vld [vmem:[%s1915 + $0xb8] sm:$0xff]
        %v1940 = vld [vmem:[%s1915 + $0xc0] sm:$0xff]
        %v1941 = vld [vmem:[%s1915 + $0xc8] sm:$0xff]
        %v1942 = vld [vmem:[%s1915 + $0xd0] sm:$0xff]
        %v1943 = vld [vmem:[%s1915 + $0xd8] sm:$0xff]
        %v1944 = vld [vmem:[%s1915 + $0xe0] sm:$0xff]
        %v1945 = vld [vmem:[%s1915 + $0xe8] sm:$0xff]
        %v1946 = vld [vmem:[%s1915 + $0xf0] sm:$0xff]
        %v1947 = vld [vmem:[%s1915 + $0xf8] sm:$0xff]
        %vm1948 = vcmask 1044480
        %v1949 = vrot.slane %v314, 3
        %v1950 = vrot.slane %v321, 3
        %v1951 = vsel %vm1948, %v1949, %v1950
        %v1952 = vrot.slane %v315, 3
        %v1953 = vrot.slane %v322, 3
        %v1954 = vsel %vm1948, %v1952, %v1953
        %v1989 = vunpack.c.l.b16 %v1916
        %v1990 = vunpack.c.h.b16 %v1916
        %v1991 = vunpack.c.l.b16 %v1917
        %v1992 = vunpack.c.h.b16 %v1917
        %v1993 = vunpack.c.l.b16 %v1918
        %v1994 = vunpack.c.h.b16 %v1918
        %v1995 = vunpack.c.l.b16 %v1919
        %v1996 = vunpack.c.h.b16 %v1919
        %v1997 = vunpack.c.l.b16 %v1920
        %v1998 = vunpack.c.h.b16 %v1920
        %v1999 = vunpack.c.l.b16 %v1921
        %v2000 = vunpack.c.h.b16 %v1921
        %v2001 = vunpack.c.l.b16 %v1922
        %v2002 = vunpack.c.h.b16 %v1922
        %v2003 = vunpack.c.l.b16 %v1923
        %v2004 = vunpack.c.h.b16 %v1923
        %v2005 = vunpack.c.l.b16 %v1924
        %v2006 = vunpack.c.h.b16 %v1924
        %v2007 = vunpack.c.l.b16 %v1925
        %v2008 = vunpack.c.h.b16 %v1925
        %v2009 = vunpack.c.l.b16 %v1926
        %v2010 = vunpack.c.h.b16 %v1926
        %v2011 = vunpack.c.l.b16 %v1927
        %v2012 = vunpack.c.h.b16 %v1927
        %v2013 = vunpack.c.l.b16 %v1928
        %v2014 = vunpack.c.h.b16 %v1928
        %v2015 = vunpack.c.l.b16 %v1929
        %v2016 = vunpack.c.h.b16 %v1929
        %v2017 = vunpack.c.l.b16 %v1930
        %v2018 = vunpack.c.h.b16 %v1930
        %v2019 = vunpack.c.l.b16 %v1931
        %v2020 = vunpack.c.h.b16 %v1931
        %v2021 = vunpack.c.l.b16 %v1932
        %v2022 = vunpack.c.h.b16 %v1932
        %v2023 = vunpack.c.l.b16 %v1933
        %v2024 = vunpack.c.h.b16 %v1933
        %v2025 = vunpack.c.l.b16 %v1934
        %v2026 = vunpack.c.h.b16 %v1934
        %v2027 = vunpack.c.l.b16 %v1935
        %v2028 = vunpack.c.h.b16 %v1935
        %v2029 = vunpack.c.l.b16 %v1936
        %v2030 = vunpack.c.h.b16 %v1936
        %v2031 = vunpack.c.l.b16 %v1937
        %v2032 = vunpack.c.h.b16 %v1937
        %v2033 = vunpack.c.l.b16 %v1938
        %v2034 = vunpack.c.h.b16 %v1938
        %v2035 = vunpack.c.l.b16 %v1939
        %v2036 = vunpack.c.h.b16 %v1939
        %v2037 = vunpack.c.l.b16 %v1940
        %v2038 = vunpack.c.h.b16 %v1940
        %v2039 = vunpack.c.l.b16 %v1941
        %v2040 = vunpack.c.h.b16 %v1941
        %v2041 = vunpack.c.l.b16 %v1942
        %v2042 = vunpack.c.h.b16 %v1942
        %v2043 = vunpack.c.l.b16 %v1943
        %v2044 = vunpack.c.h.b16 %v1943
        %v2045 = vunpack.c.l.b16 %v1944
        %v2046 = vunpack.c.h.b16 %v1944
        %v2047 = vunpack.c.l.b16 %v1945
        %v2048 = vunpack.c.h.b16 %v1945
        %v2049 = vunpack.c.l.b16 %v1946
        %v2050 = vunpack.c.h.b16 %v1946
        %v2051 = vunpack.c.l.b16 %v1947
        %v2052 = vunpack.c.h.b16 %v1947
        %v2053 = vpack.c.b16 %v1991, %v1989
        %v2054 = vpack.c.b16 %v1992, %v1990
        %v2055 = vpack.c.b16 %v1995, %v1993
        %v2056 = vpack.c.b16 %v1996, %v1994
        %v2057 = vpack.c.b16 %v1999, %v1997
        %v2058 = vpack.c.b16 %v2000, %v1998
        %v2059 = vpack.c.b16 %v2003, %v2001
        %v2060 = vpack.c.b16 %v2004, %v2002
        %v2061 = vpack.c.b16 %v2007, %v2005
        %v2062 = vpack.c.b16 %v2008, %v2006
        %v2063 = vpack.c.b16 %v2011, %v2009
        %v2064 = vpack.c.b16 %v2012, %v2010
        %v2065 = vpack.c.b16 %v2015, %v2013
        %v2066 = vpack.c.b16 %v2016, %v2014
        %v2067 = vpack.c.b16 %v2019, %v2017
        %v2068 = vpack.c.b16 %v2020, %v2018
        %v2069 = vpack.c.b16 %v2023, %v2021
        %v2070 = vpack.c.b16 %v2024, %v2022
        %v2071 = vpack.c.b16 %v2027, %v2025
        %v2072 = vpack.c.b16 %v2028, %v2026
        %v2073 = vpack.c.b16 %v2031, %v2029
        %v2074 = vpack.c.b16 %v2032, %v2030
        %v2075 = vpack.c.b16 %v2035, %v2033
        %v2076 = vpack.c.b16 %v2036, %v2034
        %v2077 = vpack.c.b16 %v2039, %v2037
        %v2078 = vpack.c.b16 %v2040, %v2038
        %v2079 = vpack.c.b16 %v2043, %v2041
        %v2080 = vpack.c.b16 %v2044, %v2042
        %v2081 = vpack.c.b16 %v2047, %v2045
        %v2082 = vpack.c.b16 %v2048, %v2046
        %v2083 = vpack.c.b16 %v2051, %v2049
        %v2084 = vpack.c.b16 %v2052, %v2050
        %2117 = vmatpush.bf16.msra.mxu0 %v2067
        %2118 = vmatpush.bf16.msra.mxu0 %v2065
        %2119 = vmatpush.bf16.msra.mxu0 %v2063
        %2120 = vmatpush.bf16.msra.mxu0 %v2061
        %2121 = vmatpush.bf16.msra.mxu0 %v2059
        %2122 = vmatpush.bf16.msra.mxu0 %v2057
        %2123 = vmatpush.bf16.msra.mxu0 %v2055
        %2124 = vmatpush.bf16.msra.mxu0 %v2053
        %2125 = vmatmul.bf16.gmra.mxu0 %v1951
        %v2126 = vpop.f32.mrf.mxu0
        %v2127 = vadd.f32 0.0, %v2126
        %v2128 = vpop.f32.mrf.mxu0
        %v2129 = vadd.f32 0.0, %v2128
        %2130 = vdwg.mxu0
        %2131 = vmatpush.bf16.msra.mxu0 %v2083
        %2132 = vmatpush.bf16.msra.mxu0 %v2081
        %2133 = vmatpush.bf16.msra.mxu0 %v2079
        %2134 = vmatpush.bf16.msra.mxu0 %v2077
        %2135 = vmatpush.bf16.msra.mxu0 %v2075
        %2136 = vmatpush.bf16.msra.mxu0 %v2073
        %2137 = vmatpush.bf16.msra.mxu0 %v2071
        %2138 = vmatpush.bf16.msra.mxu0 %v2069
        %2139 = vmatmul.bf16.gmra.mxu0 %v1954
        %v2140 = vpop.f32.mrf.mxu0
        %v2141 = vadd.f32 %v2127, %v2140
        %v2142 = vpop.f32.mrf.mxu0
        %v2143 = vadd.f32 %v2129, %v2142
        %2144 = vdwg.mxu0
        %2145 = vmatpush.bf16.msra.mxu0 %v2068
        %2146 = vmatpush.bf16.msra.mxu0 %v2066
        %2147 = vmatpush.bf16.msra.mxu0 %v2064
        %2148 = vmatpush.bf16.msra.mxu0 %v2062
        %2149 = vmatpush.bf16.msra.mxu0 %v2060
        %2150 = vmatpush.bf16.msra.mxu0 %v2058
        %2151 = vmatpush.bf16.msra.mxu0 %v2056
        %2152 = vmatpush.bf16.msra.mxu0 %v2054
        %2153 = vmatmul.bf16.gmra.mxu0 %v1951
        %v2154 = vpop.f32.mrf.mxu0
        %v2155 = vadd.f32 0.0, %v2154
        %v2156 = vpop.f32.mrf.mxu0
        %v2157 = vadd.f32 0.0, %v2156
        %2158 = vdwg.mxu0
        %2159 = vmatpush.bf16.msra.mxu0 %v2084
        %2160 = vmatpush.bf16.msra.mxu0 %v2082
        %2161 = vmatpush.bf16.msra.mxu0 %v2080
        %2162 = vmatpush.bf16.msra.mxu0 %v2078
        %2163 = vmatpush.bf16.msra.mxu0 %v2076
        %2164 = vmatpush.bf16.msra.mxu0 %v2074
        %2165 = vmatpush.bf16.msra.mxu0 %v2072
        %2166 = vmatpush.bf16.msra.mxu0 %v2070
        %2167 = vmatmul.bf16.gmra.mxu0 %v1954
        %v2168 = vpop.f32.mrf.mxu0
        %v2169 = vadd.f32 %v2155, %v2168
        %v2170 = vpop.f32.mrf.mxu0
        %v2171 = vadd.f32 %v2157, %v2170
        %2172 = vdwg.mxu0
        %v2173 = vadd.f32 %v1911, %v2141
        %v2174 = vadd.f32 %v1912, %v2169
        %v2175 = vadd.f32 %v1913, %v2143
        %v2176 = vadd.f32 %v1914, %v2171
        %s2177 = scalar_lea.vmem [#allocation2], 1792
        %v2178 = vld [vmem:[%s2177] sm:$0xff]
        %v2179 = vld [vmem:[%s2177 + $0x8] sm:$0xff]
        %v2180 = vld [vmem:[%s2177 + $0x10] sm:$0xff]
        %v2181 = vld [vmem:[%s2177 + $0x18] sm:$0xff]
        %v2182 = vld [vmem:[%s2177 + $0x20] sm:$0xff]
        %v2183 = vld [vmem:[%s2177 + $0x28] sm:$0xff]
        %v2184 = vld [vmem:[%s2177 + $0x30] sm:$0xff]
        %v2185 = vld [vmem:[%s2177 + $0x38] sm:$0xff]
        %v2186 = vld [vmem:[%s2177 + $0x40] sm:$0xff]
        %v2187 = vld [vmem:[%s2177 + $0x48] sm:$0xff]
        %v2188 = vld [vmem:[%s2177 + $0x50] sm:$0xff]
        %v2189 = vld [vmem:[%s2177 + $0x58] sm:$0xff]
        %v2190 = vld [vmem:[%s2177 + $0x60] sm:$0xff]
        %v2191 = vld [vmem:[%s2177 + $0x68] sm:$0xff]
        %v2192 = vld [vmem:[%s2177 + $0x70] sm:$0xff]
        %v2193 = vld [vmem:[%s2177 + $0x78] sm:$0xff]
        %v2194 = vld [vmem:[%s2177 + $0x80] sm:$0xff]
        %v2195 = vld [vmem:[%s2177 + $0x88] sm:$0xff]
        %v2196 = vld [vmem:[%s2177 + $0x90] sm:$0xff]
        %v2197 = vld [vmem:[%s2177 + $0x98] sm:$0xff]
        %v2198 = vld [vmem:[%s2177 + $0xa0] sm:$0xff]
        %v2199 = vld [vmem:[%s2177 + $0xa8] sm:$0xff]
        %v2200 = vld [vmem:[%s2177 + $0xb0] sm:$0xff]
        %v2201 = vld [vmem:[%s2177 + $0xb8] sm:$0xff]
        %v2202 = vld [vmem:[%s2177 + $0xc0] sm:$0xff]
        %v2203 = vld [vmem:[%s2177 + $0xc8] sm:$0xff]
        %v2204 = vld [vmem:[%s2177 + $0xd0] sm:$0xff]
        %v2205 = vld [vmem:[%s2177 + $0xd8] sm:$0xff]
        %v2206 = vld [vmem:[%s2177 + $0xe0] sm:$0xff]
        %v2207 = vld [vmem:[%s2177 + $0xe8] sm:$0xff]
        %v2208 = vld [vmem:[%s2177 + $0xf0] sm:$0xff]
        %v2209 = vld [vmem:[%s2177 + $0xf8] sm:$0xff]
        %vm2210 = vsmask.f32 4352
        %v2211 = vrot.slane %v390, 3
        %v2212 = vrot.slane %v392, 4
        %v2213 = vor.u32 %v2211, %v2212
        %v2214 = vrot.slane %v1146, 3
        %v2215 = vrot.slane %v397, 4
        %v2216 = vor.u32 %v2214, %v2215
        %v2217 = vsel %vm2210, %v2213, %v2216
        %v2218 = vrot.slane %v402, 3
        %v2219 = vrot.slane %v404, 4
        %v2220 = vor.u32 %v2218, %v2219
        %v2221 = vrot.slane %v1155, 3
        %v2222 = vrot.slane %v409, 4
        %v2223 = vor.u32 %v2221, %v2222
        %v2224 = vsel %vm2210, %v2220, %v2223
        %v2259 = vunpack.c.l.b16 %v2178
        %v2260 = vunpack.c.h.b16 %v2178
        %v2261 = vunpack.c.l.b16 %v2179
        %v2262 = vunpack.c.h.b16 %v2179
        %v2263 = vunpack.c.l.b16 %v2180
        %v2264 = vunpack.c.h.b16 %v2180
        %v2265 = vunpack.c.l.b16 %v2181
        %v2266 = vunpack.c.h.b16 %v2181
        %v2267 = vunpack.c.l.b16 %v2182
        %v2268 = vunpack.c.h.b16 %v2182
        %v2269 = vunpack.c.l.b16 %v2183
        %v2270 = vunpack.c.h.b16 %v2183
        %v2271 = vunpack.c.l.b16 %v2184
        %v2272 = vunpack.c.h.b16 %v2184
        %v2273 = vunpack.c.l.b16 %v2185
        %v2274 = vunpack.c.h.b16 %v2185
        %v2275 = vunpack.c.l.b16 %v2186
        %v2276 = vunpack.c.h.b16 %v2186
        %v2277 = vunpack.c.l.b16 %v2187
        %v2278 = vunpack.c.h.b16 %v2187
        %v2279 = vunpack.c.l.b16 %v2188
        %v2280 = vunpack.c.h.b16 %v2188
        %v2281 = vunpack.c.l.b16 %v2189
        %v2282 = vunpack.c.h.b16 %v2189
        %v2283 = vunpack.c.l.b16 %v2190
        %v2284 = vunpack.c.h.b16 %v2190
        %v2285 = vunpack.c.l.b16 %v2191
        %v2286 = vunpack.c.h.b16 %v2191
        %v2287 = vunpack.c.l.b16 %v2192
        %v2288 = vunpack.c.h.b16 %v2192
        %v2289 = vunpack.c.l.b16 %v2193
        %v2290 = vunpack.c.h.b16 %v2193
        %v2291 = vunpack.c.l.b16 %v2194
        %v2292 = vunpack.c.h.b16 %v2194
        %v2293 = vunpack.c.l.b16 %v2195
        %v2294 = vunpack.c.h.b16 %v2195
        %v2295 = vunpack.c.l.b16 %v2196
        %v2296 = vunpack.c.h.b16 %v2196
        %v2297 = vunpack.c.l.b16 %v2197
        %v2298 = vunpack.c.h.b16 %v2197
        %v2299 = vunpack.c.l.b16 %v2198
        %v2300 = vunpack.c.h.b16 %v2198
        %v2301 = vunpack.c.l.b16 %v2199
        %v2302 = vunpack.c.h.b16 %v2199
        %v2303 = vunpack.c.l.b16 %v2200
        %v2304 = vunpack.c.h.b16 %v2200
        %v2305 = vunpack.c.l.b16 %v2201
        %v2306 = vunpack.c.h.b16 %v2201
        %v2307 = vunpack.c.l.b16 %v2202
        %v2308 = vunpack.c.h.b16 %v2202
        %v2309 = vunpack.c.l.b16 %v2203
        %v2310 = vunpack.c.h.b16 %v2203
        %v2311 = vunpack.c.l.b16 %v2204
        %v2312 = vunpack.c.h.b16 %v2204
        %v2313 = vunpack.c.l.b16 %v2205
        %v2314 = vunpack.c.h.b16 %v2205
        %v2315 = vunpack.c.l.b16 %v2206
        %v2316 = vunpack.c.h.b16 %v2206
        %v2317 = vunpack.c.l.b16 %v2207
        %v2318 = vunpack.c.h.b16 %v2207
        %v2319 = vunpack.c.l.b16 %v2208
        %v2320 = vunpack.c.h.b16 %v2208
        %v2321 = vunpack.c.l.b16 %v2209
        %v2322 = vunpack.c.h.b16 %v2209
        %v2323 = vpack.c.b16 %v2261, %v2259
        %v2324 = vpack.c.b16 %v2262, %v2260
        %v2325 = vpack.c.b16 %v2265, %v2263
        %v2326 = vpack.c.b16 %v2266, %v2264
        %v2327 = vpack.c.b16 %v2269, %v2267
        %v2328 = vpack.c.b16 %v2270, %v2268
        %v2329 = vpack.c.b16 %v2273, %v2271
        %v2330 = vpack.c.b16 %v2274, %v2272
        %v2331 = vpack.c.b16 %v2277, %v2275
        %v2332 = vpack.c.b16 %v2278, %v2276
        %v2333 = vpack.c.b16 %v2281, %v2279
        %v2334 = vpack.c.b16 %v2282, %v2280
        %v2335 = vpack.c.b16 %v2285, %v2283
        %v2336 = vpack.c.b16 %v2286, %v2284
        %v2337 = vpack.c.b16 %v2289, %v2287
        %v2338 = vpack.c.b16 %v2290, %v2288
        %v2339 = vpack.c.b16 %v2293, %v2291
        %v2340 = vpack.c.b16 %v2294, %v2292
        %v2341 = vpack.c.b16 %v2297, %v2295
        %v2342 = vpack.c.b16 %v2298, %v2296
        %v2343 = vpack.c.b16 %v2301, %v2299
        %v2344 = vpack.c.b16 %v2302, %v2300
        %v2345 = vpack.c.b16 %v2305, %v2303
        %v2346 = vpack.c.b16 %v2306, %v2304
        %v2347 = vpack.c.b16 %v2309, %v2307
        %v2348 = vpack.c.b16 %v2310, %v2308
        %v2349 = vpack.c.b16 %v2313, %v2311
        %v2350 = vpack.c.b16 %v2314, %v2312
        %v2351 = vpack.c.b16 %v2317, %v2315
        %v2352 = vpack.c.b16 %v2318, %v2316
        %v2353 = vpack.c.b16 %v2321, %v2319
        %v2354 = vpack.c.b16 %v2322, %v2320
        %2387 = vmatpush.bf16.msra.mxu0 %v2337
        %2388 = vmatpush.bf16.msra.mxu0 %v2335
        %2389 = vmatpush.bf16.msra.mxu0 %v2333
        %2390 = vmatpush.bf16.msra.mxu0 %v2331
        %2391 = vmatpush.bf16.msra.mxu0 %v2329
        %2392 = vmatpush.bf16.msra.mxu0 %v2327
        %2393 = vmatpush.bf16.msra.mxu0 %v2325
        %2394 = vmatpush.bf16.msra.mxu0 %v2323
        %2395 = vmatmul.bf16.gmra.mxu0 %v2217
        %v2396 = vpop.f32.mrf.mxu0
        %v2397 = vadd.f32 0.0, %v2396
        %v2398 = vpop.f32.mrf.mxu0
        %v2399 = vadd.f32 0.0, %v2398
        %2400 = vdwg.mxu0
        %2401 = vmatpush.bf16.msra.mxu0 %v2353
        %2402 = vmatpush.bf16.msra.mxu0 %v2351
        %2403 = vmatpush.bf16.msra.mxu0 %v2349
        %2404 = vmatpush.bf16.msra.mxu0 %v2347
        %2405 = vmatpush.bf16.msra.mxu0 %v2345
        %2406 = vmatpush.bf16.msra.mxu0 %v2343
        %2407 = vmatpush.bf16.msra.mxu0 %v2341
        %2408 = vmatpush.bf16.msra.mxu0 %v2339
        %2409 = vmatmul.bf16.gmra.mxu0 %v2224
        %v2410 = vpop.f32.mrf.mxu0
        %v2411 = vadd.f32 %v2397, %v2410
        %v2412 = vpop.f32.mrf.mxu0
        %v2413 = vadd.f32 %v2399, %v2412
        %2414 = vdwg.mxu0
        %2415 = vmatpush.bf16.msra.mxu0 %v2338
        %2416 = vmatpush.bf16.msra.mxu0 %v2336
        %2417 = vmatpush.bf16.msra.mxu0 %v2334
        %2418 = vmatpush.bf16.msra.mxu0 %v2332
        %2419 = vmatpush.bf16.msra.mxu0 %v2330
        %2420 = vmatpush.bf16.msra.mxu0 %v2328
        %2421 = vmatpush.bf16.msra.mxu0 %v2326
        %2422 = vmatpush.bf16.msra.mxu0 %v2324
        %2423 = vmatmul.bf16.gmra.mxu0 %v2217
        %v2424 = vpop.f32.mrf.mxu0
        %v2425 = vadd.f32 0.0, %v2424
        %v2426 = vpop.f32.mrf.mxu0
        %v2427 = vadd.f32 0.0, %v2426
        %2428 = vdwg.mxu0
        %2429 = vmatpush.bf16.msra.mxu0 %v2354
        %2430 = vmatpush.bf16.msra.mxu0 %v2352
        %2431 = vmatpush.bf16.msra.mxu0 %v2350
        %2432 = vmatpush.bf16.msra.mxu0 %v2348
        %2433 = vmatpush.bf16.msra.mxu0 %v2346
        %2434 = vmatpush.bf16.msra.mxu0 %v2344
        %2435 = vmatpush.bf16.msra.mxu0 %v2342
        %2436 = vmatpush.bf16.msra.mxu0 %v2340
        %2437 = vmatmul.bf16.gmra.mxu0 %v2224
        %v2438 = vpop.f32.mrf.mxu0
        %v2439 = vadd.f32 %v2425, %v2438
        %v2440 = vpop.f32.mrf.mxu0
        %v2441 = vadd.f32 %v2427, %v2440
        %2442 = vdwg.mxu0
        %v2443 = vadd.f32 %v2173, %v2411
        %v2444 = vadd.f32 %v2174, %v2439
        %v2445 = vadd.f32 %v2175, %v2413
        %v2446 = vadd.f32 %v2176, %v2441
        %2447 = vst [vmem:[%s303] sm:$0xff] %v2443
        %2448 = vst [vmem:[%s303 + $0x8] sm:$0xff] %v2444
        %2449 = vst [vmem:[%s303 + $0x10] sm:$0xff] %v2445
        %2450 = vst [vmem:[%s303 + $0x18] sm:$0xff] %v2446
        %s2451 = smul.u32 2, %s20
        %p2452 = scmp.lt.s32.totalorder %s19, 1
        %s2453 = scalar_select %p2452, %s19, 1
        %p2454 = scmp.lt.s32.totalorder %s2451, 1
        %s2455 = scalar_select %p2454, %s2451, 1
        %s2456 = smul.addr %s2455, 2
        %s2457 = smul.addr %s2453, 4
        %s2458 = sadd.s32 %s2456, %s2457
        %s2459 = smul.addr %s2458, 8
        %s2460 = scalar_lea.vmem %s3, %s2459
        // Predicated region
        $region37: #{hcqt_forward.1} parent=31 // pred_check
          %p2461 = pneg %p128
        $region38: #{hcqt_forward.1} parent=31 // pred_check_branch
          %2463 = sbr.rel (%p2461) target = $region40
        $region39: #{hcqt_forward.1} parent=31 // pred_region
          %s2464 = smul.u32 2, %s20
        $region40: #{hcqt_forward.1} parent=31 // pred_fallthru
          _
      $region32: #{hcqt_forward.1} parent=5 // pred_fallthru
        _
      %p2465 = scmp.le.s32.totalorder 2, %s10
      // Predicated region
      $region41: #{hcqt_forward.1} parent=5 // pred_check
        %p2466 = pneg %p2465
      $region42: #{hcqt_forward.1} parent=5 // pred_check_branch
        %2468 = sbr.rel (%p2466) target = $region44
      $region43: #{hcqt_forward.1} parent=5 // pred_region
        %s2469 = ssub.s32 %s10, 2
        // Predicated region
        $region45: #{hcqt_forward.1} parent=43 // pred_check
          %p2470 = pneg %p134
        $region46: #{hcqt_forward.1} parent=43 // pred_check_branch
          %2472 = sbr.rel (%p2470) target = $region48
        $region47: #{hcqt_forward.1} parent=43 // pred_region
          %s2473 = smul.u32 2, %s22
          %p2474 = scmp.lt.s32.totalorder %s21, 1
          %s2475 = scalar_select %p2474, %s21, 1
          %p2476 = scmp.lt.s32.totalorder %s2473, 1
          %s2477 = scalar_select %p2476, %s2473, 1
          %s2478 = smul.addr %s2477, 2
          %s2479 = smul.addr %s2475, 4
          %s2480 = sadd.s32 %s2478, %s2479
          %s2481 = smul.addr %s2480, 8
          %s2482 = scalar_lea.vmem %s3, %s2481
        $region48: #{hcqt_forward.1} parent=43 // pred_fallthru
          _
      $region44: #{hcqt_forward.1} parent=5 // pred_fallthru
        _
    $region6: #{hcqt_forward.1} parent=1 // loop_footer
      %s14 = sadd.s32 1, %s10
    $region7: #{hcqt_forward.1} parent=1 // loop_footer_branch
      %9 = sbr.rel target = $region3
    $region8: #{hcqt_forward.1} parent=1 // loop_exit
      _
    %2483 = vsyncpa [#allocation3], 1
    %s2484 = scalar_lea.sflag [#allocation3], 1
    %2485 = vsyncpa %s2484, 1

</llo_original>
